<compile_context>
chip_gen: v7x
topology: tpu7x:2x2x1
jax: 0.10.0
libtpu: 0.0.40
codegen_flags: <defaults>
</compile_context>

<pallas_src>
import jax
import jax.numpy as jnp
from jax.experimental import pallas as pl
from jax.experimental.pallas import tpu as pltpu


# --------------------------------------------------------------------------
# Fused kernel: LayerNorm + QKV projection + attention + output projection.
# Grid = (B,); each step handles the full (N, Dp) sequence of one batch item.
# --------------------------------------------------------------------------
def make_fused_attn_kernel(D, heads, eps):
    inv_d = 1.0 / float(D)

    def kernel(x_ref, g_ref, b_ref, wq_ref, wk_ref, wv_ref, wo_ref, bo_ref,
               o_ref):
        # ---- LayerNorm (f32). Pad columns of x are zero, so sum / sum-of-
        # squares with the true 1/D are padding-safe. ----
        x = x_ref[...]                                      # (N, Dp) f32
        mean = jnp.sum(x, axis=-1, keepdims=True) * inv_d
        var = jnp.sum(x * x, axis=-1, keepdims=True) * inv_d - mean * mean
        xn = (x - mean) * jax.lax.rsqrt(var + eps)
        xn = xn * g_ref[...] + b_ref[...]                   # zero-padded gamma/beta -> pad cols = 0

        # ---- QKV projection: head-batched bf16 einsums, f32 accumulation ----
        xb = xn.astype(jnp.bfloat16)                        # cast once at the MXU boundary
        xhb = jnp.broadcast_to(xb[None], (heads,) + xb.shape)   # (H, N, Dp)

        q = jnp.einsum('hnd,hdk->hnk', xhb, wq_ref[...],
                       preferred_element_type=jnp.float32)  # (H, N, dh); scale folded into Wq
        k = jnp.einsum('hnd,hdk->hnk', xhb, wk_ref[...],
                       preferred_element_type=jnp.float32)
        v = jnp.einsum('hnd,hdk->hnk', xhb, wv_ref[...],
                       preferred_element_type=jnp.float32)

        # ---- scores + exact softmax over the full row (f32) ----
        s = jnp.einsum('hqd,hkd->hqk', q.astype(jnp.bfloat16),
                       k.astype(jnp.bfloat16),
                       preferred_element_type=jnp.float32)  # (H, N, N)
        m = jnp.max(s, axis=-1, keepdims=True)
        p = jnp.exp(s - m)
        l = jnp.sum(p, axis=-1, keepdims=True)
        p = p * pl.reciprocal(l, approx=True)               # EUP slot

        # ---- attention output and per-head output projection ----
        out_h = jnp.einsum('hqk,hkd->hqd', p.astype(jnp.bfloat16),
                           v.astype(jnp.bfloat16),
                           preferred_element_type=jnp.float32)      # (H, N, dh)
        proj = jnp.einsum('hqd,hdD->hqD', out_h.astype(jnp.bfloat16),
                          wo_ref[...],
                          preferred_element_type=jnp.float32)       # (H, N, Dp)
        out = jnp.sum(proj, axis=0) + bo_ref[...]                   # (N, Dp)

        # single lane-dense store
        o_ref[...] = out.astype(o_ref.dtype)

    return kernel


# --------------------------------------------------------------------------
# Wrapper
# --------------------------------------------------------------------------
def attention_forward(x, gamma, beta, w_qkv, w_out, b_out, *, heads, dim_head,
                      eps=1e-5):
    B, N, D = x.shape
    inner = heads * dim_head
    scale = dim_head ** (-0.5)
    Dp = ((D + 127) // 128) * 128           # lane-dense feature axis
    pad = Dp - D

    # ---- host-side layout prep (zero padding + head-major weight reshape) ----
    xp = jnp.pad(x, ((0, 0), (0, 0), (0, pad)))
    gp = jnp.pad(gamma, ((0, 0), (0, pad)))     # zero pad -> pad cols of xn are 0
    bp = jnp.pad(beta, ((0, 0), (0, pad)))

    wq = w_qkv[:, :inner]
    wk = w_qkv[:, inner:2 * inner]
    wv = w_qkv[:, 2 * inner:]

    def to_head_major(w, fold_scale=False):     # (D, inner) -> (heads, Dp, dim_head) bf16
        w = jnp.pad(w, ((0, pad), (0, 0)))
        if fold_scale:
            w = w * scale                       # fold softmax scale into Q projection
        return jnp.transpose(w.reshape(Dp, heads, dim_head), (1, 0, 2)).astype(jnp.bfloat16)

    wq_h = to_head_major(wq, fold_scale=True)
    wk_h = to_head_major(wk)
    wv_h = to_head_major(wv)
    wout_h = jnp.pad(w_out, ((0, 0), (0, pad))).reshape(heads, dim_head, Dp).astype(jnp.bfloat16)
    bout_p = jnp.pad(b_out, ((0, 0), (0, pad)))  # (1, Dp) f32

    out_p = pl.pallas_call(
        make_fused_attn_kernel(D, heads, eps),
        out_shape=jax.ShapeDtypeStruct((B, N, Dp), jnp.float32),
        grid_spec=pltpu.PrefetchScalarGridSpec(
            num_scalar_prefetch=0,
            grid=(B,),
            in_specs=[
                pl.BlockSpec((None, N, Dp), lambda b: (b, 0, 0)),              # x
                pl.BlockSpec((1, Dp), lambda b: (0, 0)),                        # gamma
                pl.BlockSpec((1, Dp), lambda b: (0, 0)),                        # beta
                pl.BlockSpec((heads, Dp, dim_head), lambda b: (0, 0, 0)),       # Wq (scaled)
                pl.BlockSpec((heads, Dp, dim_head), lambda b: (0, 0, 0)),       # Wk
                pl.BlockSpec((heads, Dp, dim_head), lambda b: (0, 0, 0)),       # Wv
                pl.BlockSpec((heads, dim_head, Dp), lambda b: (0, 0, 0)),       # W_out (head-major)
                pl.BlockSpec((1, Dp), lambda b: (0, 0)),                        # b_out
            ],
            out_specs=pl.BlockSpec((None, N, Dp), lambda b: (b, 0, 0)),
        ),
        compiler_params=pltpu.CompilerParams(
            dimension_semantics=("parallel",),          # batch axis can megacore-split
            vmem_limit_bytes=32 * 1024 * 1024,          # headroom-safe on v5e/v6e/v7x
        ),
    )(xp, gp, bp, wq_h, wk_h, wv_h, wout_h, bout_p)

    return out_p[:, :, :D]                               # strip lane padding


# --------------------------------------------------------------------------
# Pure-JAX reference (mirrors the PyTorch forward, all f32)
# --------------------------------------------------------------------------
def reference_forward(x, gamma, beta, w_qkv, w_out, b_out, *, heads, dim_head,
                      eps=1e-5):
    B, N, D = x.shape
    inner = heads * dim_head
    scale = dim_head ** (-0.5)
    mean = jnp.mean(x, axis=-1, keepdims=True)
    var = jnp.mean((x - mean) ** 2, axis=-1, keepdims=True)
    xn = (x - mean) / jnp.sqrt(var + eps) * gamma[0] + beta[0]
    qkv = xn @ w_qkv
    q, k, v = jnp.split(qkv, 3, axis=-1)

    def to_heads(t):
        return t.reshape(B, N, heads, dim_head).transpose(0, 2, 1, 3)

    q, k, v = to_heads(q), to_heads(k), to_heads(v)
    dots = jnp.einsum("bhqd,bhkd->bhqk", q, k) * scale
    attn = jax.nn.softmax(dots, axis=-1)
    out = jnp.einsum("bhqk,bhkd->bhqd", attn, v)
    out = out.transpose(0, 2, 1, 3).reshape(B, N, inner)
    return out @ w_out + b_out[0]


if __name__ == "__main__":
    # Small shapes consistent with the module: dim=32, heads=4, dim_head=16.
    B, N, D = 2, 8, 32
    heads, dim_head = 4, 16
    inner = heads * dim_head

    key = jax.random.PRNGKey(0)
    kx, kqkv, kout, kbout = jax.random.split(key, 4)

    x = jax.random.normal(kx, (B, N, D), dtype=jnp.float32)

    # Deterministic parameter init (synthetic, not a checkpoint).
    gamma = jnp.ones((1, D), dtype=jnp.float32)         # LayerNorm weight
    beta = jnp.zeros((1, D), dtype=jnp.float32)         # LayerNorm bias
    w_qkv = jax.random.normal(kqkv, (D, 3 * inner), dtype=jnp.float32) * 0.05
    w_out = jax.random.normal(kout, (inner, D), dtype=jnp.float32) * 0.05
    b_out = jax.random.normal(kbout, (1, D), dtype=jnp.float32) * 0.05

    out = attention_forward(x, gamma, beta, w_qkv, w_out, b_out,
                            heads=heads, dim_head=dim_head)
    out = jax.block_until_ready(out)

    ref = reference_forward(x, gamma, beta, w_qkv, w_out, b_out,
                            heads=heads, dim_head=dim_head)
    assert out.shape == (B, N, D)
    max_err = float(jnp.max(jnp.abs(out - ref)))
    # bf16 MXU operands + approx reciprocal -> slightly looser tolerance
    # (f32 accumulation kept throughout).
    assert jnp.allclose(out, ref, atol=2e-2, rtol=2e-2), \
        f"mismatch vs reference (max abs err {max_err})"

    print("KERNEL_OK")
</pallas_src>

<mosaic_0001>
module attributes {stable_mosaic.version = 11 : i64} {
  func.func @kernel(%arg0: i32, %arg1: memref<1x8x128xf32, #tpu.memory_space<vmem>>, %arg2: memref<1x128xf32, #tpu.memory_space<vmem>>, %arg3: memref<1x128xf32, #tpu.memory_space<vmem>>, %arg4: memref<4x128x16xbf16, #tpu.memory_space<vmem>>, %arg5: memref<4x128x16xbf16, #tpu.memory_space<vmem>>, %arg6: memref<4x128x16xbf16, #tpu.memory_space<vmem>>, %arg7: memref<4x16x128xbf16, #tpu.memory_space<vmem>>, %arg8: memref<1x128xf32, #tpu.memory_space<vmem>>, %arg9: memref<1x8x128xf32, #tpu.memory_space<vmem>>) attributes {dimension_semantics = [#tpu.dimension_semantics<parallel>], iteration_bounds = array<i64: 2>, scalar_prefetch = 0 : i64, scratch_operands = 0 : i64, tpu.core_type = #tpu.core_type<tc>, window_params = [{transform_indices = @transform_0, window_bounds = array<i64: 1, 8, 128>}, {pipeline_mode = #tpu.pipeline_mode<synchronous>, transform_indices = @transform_1, window_bounds = array<i64: 1, 128>}, {pipeline_mode = #tpu.pipeline_mode<synchronous>, transform_indices = @transform_2, window_bounds = array<i64: 1, 128>}, {pipeline_mode = #tpu.pipeline_mode<synchronous>, transform_indices = @transform_3, window_bounds = array<i64: 4, 128, 16>}, {pipeline_mode = #tpu.pipeline_mode<synchronous>, transform_indices = @transform_4, window_bounds = array<i64: 4, 128, 16>}, {pipeline_mode = #tpu.pipeline_mode<synchronous>, transform_indices = @transform_5, window_bounds = array<i64: 4, 128, 16>}, {pipeline_mode = #tpu.pipeline_mode<synchronous>, transform_indices = @transform_6, window_bounds = array<i64: 4, 16, 128>}, {pipeline_mode = #tpu.pipeline_mode<synchronous>, transform_indices = @transform_7, window_bounds = array<i64: 1, 128>}, {transform_indices = @transform_8, window_bounds = array<i64: 1, 8, 128>}]} {
    %c0 = arith.constant 0 : index
    %c0_0 = arith.constant 0 : index
    %c0_1 = arith.constant 0 : index
    %0 = vector.load %arg1[%c0, %c0_0, %c0_1] : memref<1x8x128xf32, #tpu.memory_space<vmem>>, vector<1x8x128xf32>
    %1 = vector.shape_cast %0 : vector<1x8x128xf32> to vector<8x128xf32>
    %cst = arith.constant dense<0.000000e+00> : vector<8xf32>
    %2 = vector.multi_reduction <add>, %1, %cst [1] : vector<8x128xf32> to vector<8xf32>
    %3 = vector.shape_cast %2 : vector<8xf32> to vector<8x1xf32>
    %cst_2 = arith.constant 3.125000e-02 : f32
    %4 = vector.broadcast %cst_2 : f32 to vector<8x1xf32>
    %5 = arith.mulf %3, %4 : vector<8x1xf32>
    %6 = arith.mulf %1, %1 : vector<8x128xf32>
    %cst_3 = arith.constant dense<0.000000e+00> : vector<8xf32>
    %7 = vector.multi_reduction <add>, %6, %cst_3 [1] : vector<8x128xf32> to vector<8xf32>
    %8 = vector.shape_cast %7 : vector<8xf32> to vector<8x1xf32>
    %cst_4 = arith.constant 3.125000e-02 : f32
    %9 = vector.broadcast %cst_4 : f32 to vector<8x1xf32>
    %10 = arith.mulf %8, %9 : vector<8x1xf32>
    %11 = arith.mulf %5, %5 : vector<8x1xf32>
    %12 = arith.subf %10, %11 : vector<8x1xf32>
    %13 = vector.broadcast %5 : vector<8x1xf32> to vector<8x128xf32>
    %14 = arith.subf %1, %13 : vector<8x128xf32>
    %cst_5 = arith.constant 9.99999974E-6 : f32
    %15 = vector.broadcast %cst_5 : f32 to vector<8x1xf32>
    %16 = arith.addf %12, %15 : vector<8x1xf32>
    %17 = math.rsqrt %16 : vector<8x1xf32>
    %18 = vector.broadcast %17 : vector<8x1xf32> to vector<8x128xf32>
    %19 = arith.mulf %14, %18 : vector<8x128xf32>
    %c0_6 = arith.constant 0 : index
    %c0_7 = arith.constant 0 : index
    %20 = vector.load %arg2[%c0_6, %c0_7] : memref<1x128xf32, #tpu.memory_space<vmem>>, vector<1x128xf32>
    %21 = vector.broadcast %20 : vector<1x128xf32> to vector<8x128xf32>
    %22 = arith.mulf %19, %21 : vector<8x128xf32>
    %c0_8 = arith.constant 0 : index
    %c0_9 = arith.constant 0 : index
    %23 = vector.load %arg3[%c0_8, %c0_9] : memref<1x128xf32, #tpu.memory_space<vmem>>, vector<1x128xf32>
    %24 = vector.broadcast %23 : vector<1x128xf32> to vector<8x128xf32>
    %25 = arith.addf %22, %24 : vector<8x128xf32>
    %26 = arith.truncf %25 : vector<8x128xf32> to vector<8x128xbf16>
    %27 = vector.shape_cast %26 : vector<8x128xbf16> to vector<1x8x128xbf16>
    %28 = vector.shape_cast %27 : vector<1x8x128xbf16> to vector<1x8x128xbf16>
    %29 = vector.broadcast %28 : vector<1x8x128xbf16> to vector<4x8x128xbf16>
    %c0_10 = arith.constant 0 : index
    %c0_11 = arith.constant 0 : index
    %c0_12 = arith.constant 0 : index
    %30 = vector.load %arg4[%c0_10, %c0_11, %c0_12] : memref<4x128x16xbf16, #tpu.memory_space<vmem>>, vector<4x128x16xbf16>
    "tpu.trace_start"() <{level = 10 : i32, message = "hnd,hdk->hnk"}> : () -> ()
    %cst_13 = arith.constant dense<0.000000e+00> : vector<4x8x16xf32>
    %31 = tpu.matmul %29, %30, %cst_13 {dimension_numbers = #tpu.dot_dimension_numbers<[2], [1], [1], [2], [0, 0, 0, 1, 1, 2], [0], [0]>} : vector<4x8x128xbf16>, vector<4x128x16xbf16>, vector<4x8x16xf32> -> vector<4x8x16xf32>
    "tpu.trace_stop"() : () -> ()
    %c0_14 = arith.constant 0 : index
    %c0_15 = arith.constant 0 : index
    %c0_16 = arith.constant 0 : index
    %32 = vector.load %arg5[%c0_14, %c0_15, %c0_16] : memref<4x128x16xbf16, #tpu.memory_space<vmem>>, vector<4x128x16xbf16>
    "tpu.trace_start"() <{level = 10 : i32, message = "hnd,hdk->hnk"}> : () -> ()
    %cst_17 = arith.constant dense<0.000000e+00> : vector<4x8x16xf32>
    %33 = tpu.matmul %29, %32, %cst_17 {dimension_numbers = #tpu.dot_dimension_numbers<[2], [1], [1], [2], [0, 0, 0, 1, 1, 2], [0], [0]>} : vector<4x8x128xbf16>, vector<4x128x16xbf16>, vector<4x8x16xf32> -> vector<4x8x16xf32>
    "tpu.trace_stop"() : () -> ()
    %c0_18 = arith.constant 0 : index
    %c0_19 = arith.constant 0 : index
    %c0_20 = arith.constant 0 : index
    %34 = vector.load %arg6[%c0_18, %c0_19, %c0_20] : memref<4x128x16xbf16, #tpu.memory_space<vmem>>, vector<4x128x16xbf16>
    "tpu.trace_start"() <{level = 10 : i32, message = "hnd,hdk->hnk"}> : () -> ()
    %cst_21 = arith.constant dense<0.000000e+00> : vector<4x8x16xf32>
    %35 = tpu.matmul %29, %34, %cst_21 {dimension_numbers = #tpu.dot_dimension_numbers<[2], [1], [1], [2], [0, 0, 0, 1, 1, 2], [0], [0]>} : vector<4x8x128xbf16>, vector<4x128x16xbf16>, vector<4x8x16xf32> -> vector<4x8x16xf32>
    "tpu.trace_stop"() : () -> ()
    %36 = arith.truncf %31 : vector<4x8x16xf32> to vector<4x8x16xbf16>
    %37 = arith.truncf %33 : vector<4x8x16xf32> to vector<4x8x16xbf16>
    "tpu.trace_start"() <{level = 10 : i32, message = "hqd,hkd->hqk"}> : () -> ()
    %cst_22 = arith.constant dense<0.000000e+00> : vector<4x8x8xf32>
    %38 = tpu.matmul %36, %37, %cst_22 {dimension_numbers = #tpu.dot_dimension_numbers<[2], [2], [1], [1], [0, 0, 0, 1, 1, 1], [0], [0]>} : vector<4x8x16xbf16>, vector<4x8x16xbf16>, vector<4x8x8xf32> -> vector<4x8x8xf32>
    "tpu.trace_stop"() : () -> ()
    %cst_23 = arith.constant dense<0xFF800000> : vector<4x8xf32>
    %39 = vector.multi_reduction <maximumf>, %38, %cst_23 [2] : vector<4x8x8xf32> to vector<4x8xf32>
    %40 = vector.shape_cast %39 : vector<4x8xf32> to vector<4x8x1xf32>
    %41 = vector.broadcast %40 : vector<4x8x1xf32> to vector<4x8x8xf32>
    %42 = arith.subf %38, %41 : vector<4x8x8xf32>
    %43 = math.exp %42 : vector<4x8x8xf32>
    %cst_24 = arith.constant dense<0.000000e+00> : vector<4x8xf32>
    %44 = vector.multi_reduction <add>, %43, %cst_24 [2] : vector<4x8x8xf32> to vector<4x8xf32>
    %45 = vector.shape_cast %44 : vector<4x8xf32> to vector<4x8x1xf32>
    %46 = tpu.reciprocal %45 {approx = true} : vector<4x8x1xf32> -> vector<4x8x1xf32>
    %47 = vector.broadcast %46 : vector<4x8x1xf32> to vector<4x8x8xf32>
    %48 = arith.mulf %43, %47 : vector<4x8x8xf32>
    %49 = arith.truncf %48 : vector<4x8x8xf32> to vector<4x8x8xbf16>
    %50 = arith.truncf %35 : vector<4x8x16xf32> to vector<4x8x16xbf16>
    "tpu.trace_start"() <{level = 10 : i32, message = "hqk,hkd->hqd"}> : () -> ()
    %cst_25 = arith.constant dense<0.000000e+00> : vector<4x8x16xf32>
    %51 = tpu.matmul %49, %50, %cst_25 {dimension_numbers = #tpu.dot_dimension_numbers<[2], [1], [1], [2], [0, 0, 0, 1, 1, 2], [0], [0]>} : vector<4x8x8xbf16>, vector<4x8x16xbf16>, vector<4x8x16xf32> -> vector<4x8x16xf32>
    "tpu.trace_stop"() : () -> ()
    %52 = arith.truncf %51 : vector<4x8x16xf32> to vector<4x8x16xbf16>
    %c0_26 = arith.constant 0 : index
    %c0_27 = arith.constant 0 : index
    %c0_28 = arith.constant 0 : index
    %53 = vector.load %arg7[%c0_26, %c0_27, %c0_28] : memref<4x16x128xbf16, #tpu.memory_space<vmem>>, vector<4x16x128xbf16>
    "tpu.trace_start"() <{level = 10 : i32, message = "hqd,hdD->hqD"}> : () -> ()
    %cst_29 = arith.constant dense<0.000000e+00> : vector<4x8x128xf32>
    %54 = tpu.matmul %52, %53, %cst_29 {dimension_numbers = #tpu.dot_dimension_numbers<[2], [1], [1], [2], [0, 0, 0, 1, 1, 2], [0], [0]>} : vector<4x8x16xbf16>, vector<4x16x128xbf16>, vector<4x8x128xf32> -> vector<4x8x128xf32>
    "tpu.trace_stop"() : () -> ()
    %cst_30 = arith.constant dense<0.000000e+00> : vector<8x128xf32>
    %55 = vector.multi_reduction <add>, %54, %cst_30 [0] : vector<4x8x128xf32> to vector<8x128xf32>
    %c0_31 = arith.constant 0 : index
    %c0_32 = arith.constant 0 : index
    %56 = vector.load %arg8[%c0_31, %c0_32] : memref<1x128xf32, #tpu.memory_space<vmem>>, vector<1x128xf32>
    %57 = vector.broadcast %56 : vector<1x128xf32> to vector<8x128xf32>
    %58 = arith.addf %55, %57 : vector<8x128xf32>
    %c0_33 = arith.constant 0 : index
    %c0_34 = arith.constant 0 : index
    %c0_35 = arith.constant 0 : index
    %59 = vector.load %arg9[%c0_33, %c0_34, %c0_35] : memref<1x8x128xf32, #tpu.memory_space<vmem>>, vector<1x8x128xf32>
    %60 = vector.shape_cast %59 : vector<1x8x128xf32> to vector<8x128xf32>
    %61 = vector.shape_cast %58 : vector<8x128xf32> to vector<1x8x128xf32>
    tpu.vector_store %arg9[%c0_33, %c0_34, %c0_35], %61 {strides = array<i32>} : memref<1x8x128xf32, #tpu.memory_space<vmem>>, vector<1x8x128xf32>,
    return
  }
  func.func @transform_0(%arg0: i32) -> (i32, i32, i32) {
    %c0_i32 = arith.constant 0 : i32
    %c0_i32_0 = arith.constant 0 : i32
    %c0_i32_1 = arith.constant 0 : i32
    return %arg0, %c0_i32, %c0_i32_0 : i32, i32, i32
  }
  func.func @transform_1(%arg0: i32) -> (i32, i32) {
    %c0_i32 = arith.constant 0 : i32
    %c0_i32_0 = arith.constant 0 : i32
    %c0_i32_1 = arith.constant 0 : i32
    return %c0_i32, %c0_i32_0 : i32, i32
  }
  func.func @transform_2(%arg0: i32) -> (i32, i32) {
    %c0_i32 = arith.constant 0 : i32
    %c0_i32_0 = arith.constant 0 : i32
    %c0_i32_1 = arith.constant 0 : i32
    return %c0_i32, %c0_i32_0 : i32, i32
  }
  func.func @transform_3(%arg0: i32) -> (i32, i32, i32) {
    %c0_i32 = arith.constant 0 : i32
    %c0_i32_0 = arith.constant 0 : i32
    %c0_i32_1 = arith.constant 0 : i32
    %c0_i32_2 = arith.constant 0 : i32
    return %c0_i32, %c0_i32_0, %c0_i32_1 : i32, i32, i32
  }
  func.func @transform_4(%arg0: i32) -> (i32, i32, i32) {
    %c0_i32 = arith.constant 0 : i32
    %c0_i32_0 = arith.constant 0 : i32
    %c0_i32_1 = arith.constant 0 : i32
    %c0_i32_2 = arith.constant 0 : i32
    return %c0_i32, %c0_i32_0, %c0_i32_1 : i32, i32, i32
  }
  func.func @transform_5(%arg0: i32) -> (i32, i32, i32) {
    %c0_i32 = arith.constant 0 : i32
    %c0_i32_0 = arith.constant 0 : i32
    %c0_i32_1 = arith.constant 0 : i32
    %c0_i32_2 = arith.constant 0 : i32
    return %c0_i32, %c0_i32_0, %c0_i32_1 : i32, i32, i32
  }
  func.func @transform_6(%arg0: i32) -> (i32, i32, i32) {
    %c0_i32 = arith.constant 0 : i32
    %c0_i32_0 = arith.constant 0 : i32
    %c0_i32_1 = arith.constant 0 : i32
    %c0_i32_2 = arith.constant 0 : i32
    return %c0_i32, %c0_i32_0, %c0_i32_1 : i32, i32, i32
  }
  func.func @transform_7(%arg0: i32) -> (i32, i32) {
    %c0_i32 = arith.constant 0 : i32
    %c0_i32_0 = arith.constant 0 : i32
    %c0_i32_1 = arith.constant 0 : i32
    return %c0_i32, %c0_i32_0 : i32, i32
  }
  func.func @transform_8(%arg0: i32) -> (i32, i32, i32) {
    %c0_i32 = arith.constant 0 : i32
    %c0_i32_0 = arith.constant 0 : i32
    %c0_i32_1 = arith.constant 0 : i32
    return %arg0, %c0_i32, %c0_i32_0 : i32, i32, i32
  }
}

</mosaic_0001>

<llo_original>
// kernel: tpu_custom_call.1
$region0: #{tpu_custom_call.1}
  #allocation0 [shape = 'u32[]', space=smem, size = 0x4, offset = 0x4, fixed_abs, tag = 'smem constant byte address 0x4 - core index']
  #allocation1 [shape = 'u32[144,128]{1,0:T(1,128)}', space=vmem, size = 0x12000, scoped, tag = 'internal scratch']
  %s0 = inlined_call_operand.vmem [shape: f32[2,8,128], index: 0, kind: input, shape index: {}]
  %s1 = inlined_call_operand.vmem [shape: f32[1,128], index: 1, kind: input, shape index: {}]
  %s2 = inlined_call_operand.vmem [shape: f32[1,128], index: 2, kind: input, shape index: {}]
  %s3 = inlined_call_operand.vmem [shape: bf16[4,128,16], index: 3, kind: input, shape index: {}]
  %s4 = inlined_call_operand.vmem [shape: bf16[4,128,16], index: 4, kind: input, shape index: {}]
  %s5 = inlined_call_operand.vmem [shape: bf16[4,128,16], index: 5, kind: input, shape index: {}]
  %s6 = inlined_call_operand.vmem [shape: bf16[4,16,128], index: 6, kind: input, shape index: {}]
  %s7 = inlined_call_operand.vmem [shape: f32[1,128], index: 7, kind: input, shape index: {}]
  %s8 = inlined_call_operand.hbm [shape: f32[2,8,128], index: 8, kind: output, shape index: {}]
  %s9 = sld [smem:[#allocation0]]
  $region65: #{tpu_custom_call.1} parent=0
    _
  %s11 = ssub.s32 1, %s9
  %s12 = scalar_select 0, %s11, %s9
  $region1: #{tpu_custom_call.1} parent=0
    #allocation2 [shape = 'u8[8192]{0}', space=vmem, size = 0x2000, scoped, tag = 'output window, operand 0']
    #allocation3 [shape = 's32[2]{0}', space=sflag, size = 0x8, scoped, tag = 'scoped memory for tpu_custom_call.1']
    %13 = vsyncpa [#allocation3], 0
    %s14 = scalar_lea.sflag [#allocation3], 1
    %15 = vsyncpa %s14, 0
    loop: start=0, step=1, limit=4
    $region2: #{tpu_custom_call.1} parent=1 // loop_pre_header
      _
    $region3: #{tpu_custom_call.1} parent=1 // loop_header
      %s17 = sphi 0, %s21
      %p18 = scmp.ge.s32.totalorder %s17, 4
      %s27 = sphi 0, %s29
      %s30 = sphi 0, %s27
      %s31 = sphi 0, %s30
      %s47 = sphi 0, %s31
      %s51 = sphi 0, %s51
      %s53 = sphi 0, %s51
      %s54 = sphi 0, %s53
      %s68 = sphi 0, %s54
      %s72 = sphi 0, %s72
      %s74 = sphi 0, %s72
      %s75 = sphi 0, %s74
      %s89 = sphi 0, %s75
      %s93 = sphi 0, %s93
      %s95 = sphi 0, %s93
      %s96 = sphi 0, %s95
      %s110 = sphi 0, %s96
      %s114 = sphi 0, %s114
      %s116 = sphi 0, %s114
      %s117 = sphi 0, %s116
      %s131 = sphi 0, %s117
      %s135 = sphi 0, %s135
      %s137 = sphi 0, %s135
      %s138 = sphi 0, %s137
      %s152 = sphi 0, %s138
      %s156 = sphi 0, %s156
      %s158 = sphi 0, %s156
      %s159 = sphi 0, %s158
      %s173 = sphi 0, %s159
      %s177 = sphi 0, %s177
      %s179 = sphi 0, %s177
      %s180 = sphi 0, %s179
      %s194 = sphi 0, %s180
      %s200 = sphi 0, %s202
      %s203 = sphi 0, %s200
      %s204 = sphi 0, %s203
      %s220 = sphi 0, %s204
    $region4: #{tpu_custom_call.1} parent=1 // loop_header_branch
      %20 = sbr.rel (%p18) target = $region8
    $region5: #{tpu_custom_call.1} parent=1 // loop_body
      %s22 = ssub.s32 %s17, 1
      %s23 = ssub.s32 %s17, 2
      %s24 = sadd.s32 %s17, 1
      %s25 = ssub.s32 %s17, %s24
      %p26 = scmp.eq.s32.totalorder %s25, 0
      %s28 = sadd.s32 %s27, 1
      %s29 = scalar_select %p26, %s27, %s28
      %p32 = pneg %p26
      %p33 = scmp.eq.s32.totalorder %s17, 1
      %p34 = por %p32, %p33
      %p35 = scmp.ne.s32.totalorder %s27, %s30
      %p36 = scmp.eq.s32.totalorder %s17, 0
      %p37 = por %p35, %p36
      %p38 = scmp.ne.s32.totalorder %s27, %s30
      %p39 = scmp.eq.s32.totalorder %s22, 1
      %p40 = por %p38, %p39
      %p41 = scmp.ne.s32.totalorder %s30, %s31
      %p42 = scmp.eq.s32.totalorder %s22, 0
      %p43 = por %p41, %p42
      %p44 = scmp.ne.s32.totalorder %s30, %s31
      %p45 = scmp.eq.s32.totalorder %s23, 1
      %p46 = por %p44, %p45
      %p48 = scmp.ne.s32.totalorder %s31, %s47
      %p49 = scmp.eq.s32.totalorder %s23, 0
      %p50 = por %p48, %p49
      %s52 = sadd.s32 %s51, 1
      %p55 = scmp.eq.s32.totalorder %s17, 1
      %p56 = scmp.ne.s32.totalorder %s51, %s53
      %p57 = scmp.eq.s32.totalorder %s17, 0
      %p58 = por %p56, %p57
      %p59 = scmp.ne.s32.totalorder %s51, %s53
      %p60 = scmp.eq.s32.totalorder %s22, 1
      %p61 = por %p59, %p60
      %p62 = scmp.ne.s32.totalorder %s53, %s54
      %p63 = scmp.eq.s32.totalorder %s22, 0
      %p64 = por %p62, %p63
      %p65 = scmp.ne.s32.totalorder %s53, %s54
      %p66 = scmp.eq.s32.totalorder %s23, 1
      %p67 = por %p65, %p66
      %p69 = scmp.ne.s32.totalorder %s54, %s68
      %p70 = scmp.eq.s32.totalorder %s23, 0
      %p71 = por %p69, %p70
      %s73 = sadd.s32 %s72, 1
      %p76 = scmp.eq.s32.totalorder %s17, 1
      %p77 = scmp.ne.s32.totalorder %s72, %s74
      %p78 = scmp.eq.s32.totalorder %s17, 0
      %p79 = por %p77, %p78
      %p80 = scmp.ne.s32.totalorder %s72, %s74
      %p81 = scmp.eq.s32.totalorder %s22, 1
      %p82 = por %p80, %p81
      %p83 = scmp.ne.s32.totalorder %s74, %s75
      %p84 = scmp.eq.s32.totalorder %s22, 0
      %p85 = por %p83, %p84
      %p86 = scmp.ne.s32.totalorder %s74, %s75
      %p87 = scmp.eq.s32.totalorder %s23, 1
      %p88 = por %p86, %p87
      %p90 = scmp.ne.s32.totalorder %s75, %s89
      %p91 = scmp.eq.s32.totalorder %s23, 0
      %p92 = por %p90, %p91
      %s94 = sadd.s32 %s93, 1
      %p97 = scmp.eq.s32.totalorder %s17, 1
      %p98 = scmp.ne.s32.totalorder %s93, %s95
      %p99 = scmp.eq.s32.totalorder %s17, 0
      %p100 = por %p98, %p99
      %p101 = scmp.ne.s32.totalorder %s93, %s95
      %p102 = scmp.eq.s32.totalorder %s22, 1
      %p103 = por %p101, %p102
      %p104 = scmp.ne.s32.totalorder %s95, %s96
      %p105 = scmp.eq.s32.totalorder %s22, 0
      %p106 = por %p104, %p105
      %p107 = scmp.ne.s32.totalorder %s95, %s96
      %p108 = scmp.eq.s32.totalorder %s23, 1
      %p109 = por %p107, %p108
      %p111 = scmp.ne.s32.totalorder %s96, %s110
      %p112 = scmp.eq.s32.totalorder %s23, 0
      %p113 = por %p111, %p112
      %s115 = sadd.s32 %s114, 1
      %p118 = scmp.eq.s32.totalorder %s17, 1
      %p119 = scmp.ne.s32.totalorder %s114, %s116
      %p120 = scmp.eq.s32.totalorder %s17, 0
      %p121 = por %p119, %p120
      %p122 = scmp.ne.s32.totalorder %s114, %s116
      %p123 = scmp.eq.s32.totalorder %s22, 1
      %p124 = por %p122, %p123
      %p125 = scmp.ne.s32.totalorder %s116, %s117
      %p126 = scmp.eq.s32.totalorder %s22, 0
      %p127 = por %p125, %p126
      %p128 = scmp.ne.s32.totalorder %s116, %s117
      %p129 = scmp.eq.s32.totalorder %s23, 1
      %p130 = por %p128, %p129
      %p132 = scmp.ne.s32.totalorder %s117, %s131
      %p133 = scmp.eq.s32.totalorder %s23, 0
      %p134 = por %p132, %p133
      %s136 = sadd.s32 %s135, 1
      %p139 = scmp.eq.s32.totalorder %s17, 1
      %p140 = scmp.ne.s32.totalorder %s135, %s137
      %p141 = scmp.eq.s32.totalorder %s17, 0
      %p142 = por %p140, %p141
      %p143 = scmp.ne.s32.totalorder %s135, %s137
      %p144 = scmp.eq.s32.totalorder %s22, 1
      %p145 = por %p143, %p144
      %p146 = scmp.ne.s32.totalorder %s137, %s138
      %p147 = scmp.eq.s32.totalorder %s22, 0
      %p148 = por %p146, %p147
      %p149 = scmp.ne.s32.totalorder %s137, %s138
      %p150 = scmp.eq.s32.totalorder %s23, 1
      %p151 = por %p149, %p150
      %p153 = scmp.ne.s32.totalorder %s138, %s152
      %p154 = scmp.eq.s32.totalorder %s23, 0
      %p155 = por %p153, %p154
      %s157 = sadd.s32 %s156, 1
      %p160 = scmp.eq.s32.totalorder %s17, 1
      %p161 = scmp.ne.s32.totalorder %s156, %s158
      %p162 = scmp.eq.s32.totalorder %s17, 0
      %p163 = por %p161, %p162
      %p164 = scmp.ne.s32.totalorder %s156, %s158
      %p165 = scmp.eq.s32.totalorder %s22, 1
      %p166 = por %p164, %p165
      %p167 = scmp.ne.s32.totalorder %s158, %s159
      %p168 = scmp.eq.s32.totalorder %s22, 0
      %p169 = por %p167, %p168
      %p170 = scmp.ne.s32.totalorder %s158, %s159
      %p171 = scmp.eq.s32.totalorder %s23, 1
      %p172 = por %p170, %p171
      %p174 = scmp.ne.s32.totalorder %s159, %s173
      %p175 = scmp.eq.s32.totalorder %s23, 0
      %p176 = por %p174, %p175
      %s178 = sadd.s32 %s177, 1
      %p181 = scmp.eq.s32.totalorder %s17, 1
      %p182 = scmp.ne.s32.totalorder %s177, %s179
      %p183 = scmp.eq.s32.totalorder %s17, 0
      %p184 = por %p182, %p183
      %p185 = scmp.ne.s32.totalorder %s177, %s179
      %p186 = scmp.eq.s32.totalorder %s22, 1
      %p187 = por %p185, %p186
      %p188 = scmp.ne.s32.totalorder %s179, %s180
      %p189 = scmp.eq.s32.totalorder %s22, 0
      %p190 = por %p188, %p189
      %p191 = scmp.ne.s32.totalorder %s179, %s180
      %p192 = scmp.eq.s32.totalorder %s23, 1
      %p193 = por %p191, %p192
      %p195 = scmp.ne.s32.totalorder %s180, %s194
      %p196 = scmp.eq.s32.totalorder %s23, 0
      %p197 = por %p195, %p196
      %s198 = ssub.s32 %s17, %s24
      %p199 = scmp.eq.s32.totalorder %s198, 0
      %s201 = sadd.s32 %s200, 1
      %s202 = scalar_select %p199, %s200, %s201
      %p205 = pneg %p199
      %p206 = scmp.eq.s32.totalorder %s17, 1
      %p207 = por %p205, %p206
      %p208 = scmp.ne.s32.totalorder %s200, %s203
      %p209 = scmp.eq.s32.totalorder %s17, 0
      %p210 = por %p208, %p209
      %p211 = scmp.ne.s32.totalorder %s200, %s203
      %p212 = scmp.eq.s32.totalorder %s22, 1
      %p213 = por %p211, %p212
      %p214 = scmp.ne.s32.totalorder %s203, %s204
      %p215 = scmp.eq.s32.totalorder %s22, 0
      %p216 = por %p214, %p215
      %p217 = scmp.ne.s32.totalorder %s203, %s204
      %p218 = scmp.eq.s32.totalorder %s23, 1
      %p219 = por %p217, %p218
      %p221 = scmp.ne.s32.totalorder %s204, %s220
      %p222 = scmp.eq.s32.totalorder %s23, 0
      %p223 = por %p221, %p222
      %p224 = scmp.le.s32.totalorder 1, %s17
      %p225 = scmp.lt.s32.totalorder %s17, 3
      %p226 = pnand %p224, %p225
      %p227 = pneg %p226
      // Predicated region
      $region9: #{tpu_custom_call.1} parent=5 // pred_check
        _
      $region10: #{tpu_custom_call.1} parent=5 // pred_check_branch
        %229 = sbr.rel (%p226) target = $region12
      $region11: #{tpu_custom_call.1} parent=5 // pred_region
        %s230 = ssub.s32 %s17, 1
        // Predicated region
        $region13: #{tpu_custom_call.1} parent=11 // pred_check
          %p231 = pneg %p64
        $region14: #{tpu_custom_call.1} parent=11 // pred_check_branch
          %233 = sbr.rel (%p231) target = $region16
        $region15: #{tpu_custom_call.1} parent=11 // pred_region
          _
        $region16: #{tpu_custom_call.1} parent=11 // pred_fallthru
          _
        // Predicated region
        $region17: #{tpu_custom_call.1} parent=11 // pred_check
          %p234 = pneg %p85
        $region18: #{tpu_custom_call.1} parent=11 // pred_check_branch
          %236 = sbr.rel (%p234) target = $region20
        $region19: #{tpu_custom_call.1} parent=11 // pred_region
          _
        $region20: #{tpu_custom_call.1} parent=11 // pred_fallthru
          _
        // Predicated region
        $region21: #{tpu_custom_call.1} parent=11 // pred_check
          %p237 = pneg %p106
        $region22: #{tpu_custom_call.1} parent=11 // pred_check_branch
          %239 = sbr.rel (%p237) target = $region24
        $region23: #{tpu_custom_call.1} parent=11 // pred_region
          _
        $region24: #{tpu_custom_call.1} parent=11 // pred_fallthru
          _
        // Predicated region
        $region25: #{tpu_custom_call.1} parent=11 // pred_check
          %p240 = pneg %p127
        $region26: #{tpu_custom_call.1} parent=11 // pred_check_branch
          %242 = sbr.rel (%p240) target = $region28
        $region27: #{tpu_custom_call.1} parent=11 // pred_region
          _
        $region28: #{tpu_custom_call.1} parent=11 // pred_fallthru
          _
        // Predicated region
        $region29: #{tpu_custom_call.1} parent=11 // pred_check
          %p243 = pneg %p148
        $region30: #{tpu_custom_call.1} parent=11 // pred_check_branch
          %245 = sbr.rel (%p243) target = $region32
        $region31: #{tpu_custom_call.1} parent=11 // pred_region
          _
        $region32: #{tpu_custom_call.1} parent=11 // pred_fallthru
          _
        // Predicated region
        $region33: #{tpu_custom_call.1} parent=11 // pred_check
          %p246 = pneg %p169
        $region34: #{tpu_custom_call.1} parent=11 // pred_check_branch
          %248 = sbr.rel (%p246) target = $region36
        $region35: #{tpu_custom_call.1} parent=11 // pred_region
          _
        $region36: #{tpu_custom_call.1} parent=11 // pred_fallthru
          _
        // Predicated region
        $region37: #{tpu_custom_call.1} parent=11 // pred_check
          %p249 = pneg %p190
        $region38: #{tpu_custom_call.1} parent=11 // pred_check_branch
          %251 = sbr.rel (%p249) target = $region40
        $region39: #{tpu_custom_call.1} parent=11 // pred_region
          _
        $region40: #{tpu_custom_call.1} parent=11 // pred_fallthru
          _
      $region12: #{tpu_custom_call.1} parent=5 // pred_fallthru
        _
      %p252 = scmp.lt.s32.totalorder %s17, 2
      // Predicated region
      $region41: #{tpu_custom_call.1} parent=5 // pred_check
        %p253 = pneg %p252
      $region42: #{tpu_custom_call.1} parent=5 // pred_check_branch
        %255 = sbr.rel (%p253) target = $region44
      $region43: #{tpu_custom_call.1} parent=5 // pred_region
        // Predicated region
        $region45: #{tpu_custom_call.1} parent=43 // pred_check
          %p256 = pneg %p37
        $region46: #{tpu_custom_call.1} parent=43 // pred_check_branch
          %258 = sbr.rel (%p256) target = $region48
        $region47: #{tpu_custom_call.1} parent=43 // pred_region
          %p259 = scmp.lt.s32.totalorder %s17, 1
          %s260 = scalar_select %p259, %s17, 1
          %s261 = smul.addr %s260, 8
          %s262 = scalar_lea.vmem %s0, %s261
        $region48: #{tpu_custom_call.1} parent=43 // pred_fallthru
          _
      $region44: #{tpu_custom_call.1} parent=5 // pred_fallthru
        _
      %p263 = scmp.le.s32.totalorder 1, %s17
      %p264 = scmp.lt.s32.totalorder %s17, 3
      %p265 = pnand %p263, %p264
      %p266 = pneg %p265
      // Predicated region
      $region49: #{tpu_custom_call.1} parent=5 // pred_check
        _
      $region50: #{tpu_custom_call.1} parent=5 // pred_check_branch
        %268 = sbr.rel (%p265) target = $region52
      $region51: #{tpu_custom_call.1} parent=5 // pred_region
        %s269 = ssub.s32 %s17, 1
        %p270 = scmp.lt.s32.totalorder %s22, 1
        %s271 = scalar_select %p270, %s22, 1
        %s272 = smul.addr %s271, 8
        %s273 = scalar_lea.vmem %s0, %s272
        %p274 = pneg %p43
        %p275 = pneg %p40
        %p276 = pneg %p64
        %p277 = pneg %p61
        %p278 = pneg %p85
        %p279 = pneg %p82
        %p280 = pneg %p106
        %p281 = pneg %p103
        %p282 = pneg %p127
        %p283 = pneg %p124
        %p284 = pneg %p148
        %p285 = pneg %p145
        %p286 = pneg %p169
        %p287 = pneg %p166
        %p288 = pneg %p190
        %p289 = pneg %p187
        %p290 = pneg %p216
        %p291 = pneg %p213
        %s292 = sand.u32 %s203, 1
        %s293 = scalar_lea.sflag [#allocation3], %s292
        %s294 = sand.u32 %s203, 1
        %s295 = smul.addr %s294, 8
        %s296 = scalar_lea.vmem [#allocation2], %s295
        %p297 = scmp.lt.s32.totalorder %s22, 1
        %s298 = scalar_select %p297, %s22, 1
        %s299 = smul.addr %s298, 8
        %s300 = scalar_lea.vmem %s0, %s299
        %v302 = vld [vmem:[%s300] sm:$0xff]
        %303 = vadd.xlane.f32.xlu0 %v302
        %v304 = vpop.xlane.xlu0 %303
        %v305 = vmul.f32 %v304, 0.03125
        %v306 = vmul.f32 %v302, %v302
        %307 = vadd.xlane.f32.xlu0 %v306
        %v308 = vpop.xlane.xlu0 %307
        %v309 = vmul.f32 %v308, 0.03125
        %v310 = vmul.f32 %v305, %v305
        %v311 = vsub.f32 %v309, %v310
        %v312 = vsub.f32 %v302, %v305
        %v313 = vadd.f32 %v311, 1e-05
        %v314 = vrsqrt.pop %v313
        %v315 = vmul.f32 %v312, %v314
        %v316 = vld [vmem:[%s1] sm:$0x1]
        %v318 = vlaneseq
        %v319 = vshrl.u32 %v318, 7
        %v320 = vsub.s32 0, %v319
        %v321 = vrot.slane %v316, %v320
        %v323 = vmul.f32 %v315, %v321
        %v324 = vld [vmem:[%s2] sm:$0x1]
        %v326 = vlaneseq
        %v327 = vshrl.u32 %v326, 7
        %v328 = vsub.s32 0, %v327
        %v329 = vrot.slane %v324, %v328
        %v331 = vadd.f32 %v323, %v329
        %v332 = vpack.c.bf16 %v331, %v331
        %v333 = vld [vmem:[%s3] sm:$0xf]
        %v334 = vld [vmem:[%s3 + $0x4] sm:$0xf]
        %v335 = vld [vmem:[%s3 + $0x8] sm:$0xf]
        %v336 = vld [vmem:[%s3 + $0xc] sm:$0xf]
        %v337 = vld [vmem:[%s3 + $0x10] sm:$0xf]
        %v338 = vld [vmem:[%s3 + $0x14] sm:$0xf]
        %v339 = vld [vmem:[%s3 + $0x18] sm:$0xf]
        %v340 = vld [vmem:[%s3 + $0x1c] sm:$0xf]
        %v341 = vld [vmem:[%s3 + $0x20] sm:$0xf]
        %v342 = vld [vmem:[%s3 + $0x24] sm:$0xf]
        %v343 = vld [vmem:[%s3 + $0x28] sm:$0xf]
        %v344 = vld [vmem:[%s3 + $0x2c] sm:$0xf]
        %v345 = vld [vmem:[%s3 + $0x30] sm:$0xf]
        %v346 = vld [vmem:[%s3 + $0x34] sm:$0xf]
        %v347 = vld [vmem:[%s3 + $0x38] sm:$0xf]
        %v348 = vld [vmem:[%s3 + $0x3c] sm:$0xf]
        %v349 = vld [vmem:[%s3 + $0x40] sm:$0xf]
        %v350 = vld [vmem:[%s3 + $0x44] sm:$0xf]
        %v351 = vld [vmem:[%s3 + $0x48] sm:$0xf]
        %v352 = vld [vmem:[%s3 + $0x4c] sm:$0xf]
        %v353 = vld [vmem:[%s3 + $0x50] sm:$0xf]
        %v354 = vld [vmem:[%s3 + $0x54] sm:$0xf]
        %v355 = vld [vmem:[%s3 + $0x58] sm:$0xf]
        %v356 = vld [vmem:[%s3 + $0x5c] sm:$0xf]
        %v357 = vld [vmem:[%s3 + $0x60] sm:$0xf]
        %v358 = vld [vmem:[%s3 + $0x64] sm:$0xf]
        %v359 = vld [vmem:[%s3 + $0x68] sm:$0xf]
        %v360 = vld [vmem:[%s3 + $0x6c] sm:$0xf]
        %v361 = vld [vmem:[%s3 + $0x70] sm:$0xf]
        %v362 = vld [vmem:[%s3 + $0x74] sm:$0xf]
        %v363 = vld [vmem:[%s3 + $0x78] sm:$0xf]
        %v364 = vld [vmem:[%s3 + $0x7c] sm:$0xf]
        %v365 = vld [vmem:[%s3 + $0x80] sm:$0xf]
        %v366 = vld [vmem:[%s3 + $0x84] sm:$0xf]
        %v367 = vld [vmem:[%s3 + $0x88] sm:$0xf]
        %v368 = vld [vmem:[%s3 + $0x8c] sm:$0xf]
        %v369 = vld [vmem:[%s3 + $0x90] sm:$0xf]
        %v370 = vld [vmem:[%s3 + $0x94] sm:$0xf]
        %v371 = vld [vmem:[%s3 + $0x98] sm:$0xf]
        %v372 = vld [vmem:[%s3 + $0x9c] sm:$0xf]
        %v373 = vld [vmem:[%s3 + $0xa0] sm:$0xf]
        %v374 = vld [vmem:[%s3 + $0xa4] sm:$0xf]
        %v375 = vld [vmem:[%s3 + $0xa8] sm:$0xf]
        %v376 = vld [vmem:[%s3 + $0xac] sm:$0xf]
        %v377 = vld [vmem:[%s3 + $0xb0] sm:$0xf]
        %v378 = vld [vmem:[%s3 + $0xb4] sm:$0xf]
        %v379 = vld [vmem:[%s3 + $0xb8] sm:$0xf]
        %v380 = vld [vmem:[%s3 + $0xbc] sm:$0xf]
        %v381 = vld [vmem:[%s3 + $0xc0] sm:$0xf]
        %v382 = vld [vmem:[%s3 + $0xc4] sm:$0xf]
        %v383 = vld [vmem:[%s3 + $0xc8] sm:$0xf]
        %v384 = vld [vmem:[%s3 + $0xcc] sm:$0xf]
        %v385 = vld [vmem:[%s3 + $0xd0] sm:$0xf]
        %v386 = vld [vmem:[%s3 + $0xd4] sm:$0xf]
        %v387 = vld [vmem:[%s3 + $0xd8] sm:$0xf]
        %v388 = vld [vmem:[%s3 + $0xdc] sm:$0xf]
        %v389 = vld [vmem:[%s3 + $0xe0] sm:$0xf]
        %v390 = vld [vmem:[%s3 + $0xe4] sm:$0xf]
        %v391 = vld [vmem:[%s3 + $0xe8] sm:$0xf]
        %v392 = vld [vmem:[%s3 + $0xec] sm:$0xf]
        %v393 = vld [vmem:[%s3 + $0xf0] sm:$0xf]
        %v394 = vld [vmem:[%s3 + $0xf4] sm:$0xf]
        %v395 = vld [vmem:[%s3 + $0xf8] sm:$0xf]
        %v396 = vld [vmem:[%s3 + $0xfc] sm:$0xf]
        %v413 = vunpack.c.l.b16 %v333
        %v414 = vunpack.c.l.b16 %v334
        %v415 = vunpack.c.l.b16 %v335
        %v416 = vunpack.c.l.b16 %v336
        %v417 = vunpack.c.l.b16 %v337
        %v418 = vunpack.c.l.b16 %v338
        %v419 = vunpack.c.l.b16 %v339
        %v420 = vunpack.c.l.b16 %v340
        %v421 = vunpack.c.l.b16 %v341
        %v422 = vunpack.c.l.b16 %v342
        %v423 = vunpack.c.l.b16 %v343
        %v424 = vunpack.c.l.b16 %v344
        %v425 = vunpack.c.l.b16 %v345
        %v426 = vunpack.c.l.b16 %v346
        %v427 = vunpack.c.l.b16 %v347
        %v428 = vunpack.c.l.b16 %v348
        %v429 = vpack.c.b16 %v414, %v413
        %v430 = vpack.c.b16 %v416, %v415
        %v431 = vpack.c.b16 %v418, %v417
        %v432 = vpack.c.b16 %v420, %v419
        %v433 = vpack.c.b16 %v422, %v421
        %v434 = vpack.c.b16 %v424, %v423
        %v435 = vpack.c.b16 %v426, %v425
        %v436 = vpack.c.b16 %v428, %v427
        %445 = vmatprep.subr.bf16.mxu0 0
        %446 = vmatpush1.bf16.msra.mxu0 %v429
        %447 = vmatprep.subr.bf16.mxu0 0
        %448 = vmatpush1.bf16.msra.mxu0 %v430
        %449 = vmatprep.subr.bf16.mxu0 0
        %450 = vmatpush1.bf16.msra.mxu0 %v431
        %451 = vmatprep.subr.bf16.mxu0 0
        %452 = vmatpush1.bf16.msra.mxu0 %v432
        %453 = vmatprep.subr.bf16.mxu0 0
        %454 = vmatpush1.bf16.msra.mxu0 %v433
        %455 = vmatprep.subr.bf16.mxu0 0
        %456 = vmatpush1.bf16.msra.mxu0 %v434
        %457 = vmatprep.subr.bf16.mxu0 0
        %458 = vmatpush1.bf16.msra.mxu0 %v435
        %459 = vmatprep.subr.bf16.mxu0 0
        %460 = vmatpush1.bf16.msra.mxu0 %v436
        %461 = vmatprep.subr.bf16.mxu0 0
        %462 = vmatpush1.bf16.msra.mxu0 0
        %463 = vmatprep.subr.bf16.mxu0 0
        %464 = vmatpush1.bf16.msra.mxu0 0
        %465 = vmatprep.subr.bf16.mxu0 0
        %466 = vmatpush1.bf16.msra.mxu0 0
        %467 = vmatprep.subr.bf16.mxu0 0
        %468 = vmatpush1.bf16.msra.mxu0 0
        %469 = vmatprep.subr.bf16.mxu0 0
        %470 = vmatpush1.bf16.msra.mxu0 0
        %471 = vmatprep.subr.bf16.mxu0 0
        %472 = vmatpush1.bf16.msra.mxu0 0
        %473 = vmatprep.subr.bf16.mxu0 0
        %474 = vmatpush1.bf16.msra.mxu0 0
        %475 = vmatprep.subr.bf16.mxu0 0
        %476 = vmatpush1.bf16.msra.mxu0 0
        %477 = vmatprep.mubr.bf16.mxu0 0
        %478 = vmatmul.mubr.bf16.gmra.mrb[0].mxu0 %v332
        %v479 = vpop.f32.mrb[0].mxu0
        %v480 = vadd.f32 0.0, %v479
        %v481 = vpop.f32.mrb[0].mxu0
        %v482 = vpop.f32.mrb[0].mxu0
        %v483 = vpop.f32.mrb[0].mxu0
        %484 = vdwg.mxu0
        %v501 = vunpack.c.l.b16 %v349
        %v502 = vunpack.c.l.b16 %v350
        %v503 = vunpack.c.l.b16 %v351
        %v504 = vunpack.c.l.b16 %v352
        %v505 = vunpack.c.l.b16 %v353
        %v506 = vunpack.c.l.b16 %v354
        %v507 = vunpack.c.l.b16 %v355
        %v508 = vunpack.c.l.b16 %v356
        %v509 = vunpack.c.l.b16 %v357
        %v510 = vunpack.c.l.b16 %v358
        %v511 = vunpack.c.l.b16 %v359
        %v512 = vunpack.c.l.b16 %v360
        %v513 = vunpack.c.l.b16 %v361
        %v514 = vunpack.c.l.b16 %v362
        %v515 = vunpack.c.l.b16 %v363
        %v516 = vunpack.c.l.b16 %v364
        %v517 = vpack.c.b16 %v502, %v501
        %v518 = vpack.c.b16 %v504, %v503
        %v519 = vpack.c.b16 %v506, %v505
        %v520 = vpack.c.b16 %v508, %v507
        %v521 = vpack.c.b16 %v510, %v509
        %v522 = vpack.c.b16 %v512, %v511
        %v523 = vpack.c.b16 %v514, %v513
        %v524 = vpack.c.b16 %v516, %v515
        %533 = vmatprep.subr.bf16.mxu0 0
        %534 = vmatpush1.bf16.msra.mxu0 %v517
        %535 = vmatprep.subr.bf16.mxu0 0
        %536 = vmatpush1.bf16.msra.mxu0 %v518
        %537 = vmatprep.subr.bf16.mxu0 0
        %538 = vmatpush1.bf16.msra.mxu0 %v519
        %539 = vmatprep.subr.bf16.mxu0 0
        %540 = vmatpush1.bf16.msra.mxu0 %v520
        %541 = vmatprep.subr.bf16.mxu0 0
        %542 = vmatpush1.bf16.msra.mxu0 %v521
        %543 = vmatprep.subr.bf16.mxu0 0
        %544 = vmatpush1.bf16.msra.mxu0 %v522
        %545 = vmatprep.subr.bf16.mxu0 0
        %546 = vmatpush1.bf16.msra.mxu0 %v523
        %547 = vmatprep.subr.bf16.mxu0 0
        %548 = vmatpush1.bf16.msra.mxu0 %v524
        %549 = vmatprep.subr.bf16.mxu0 0
        %550 = vmatpush1.bf16.msra.mxu0 0
        %551 = vmatprep.subr.bf16.mxu0 0
        %552 = vmatpush1.bf16.msra.mxu0 0
        %553 = vmatprep.subr.bf16.mxu0 0
        %554 = vmatpush1.bf16.msra.mxu0 0
        %555 = vmatprep.subr.bf16.mxu0 0
        %556 = vmatpush1.bf16.msra.mxu0 0
        %557 = vmatprep.subr.bf16.mxu0 0
        %558 = vmatpush1.bf16.msra.mxu0 0
        %559 = vmatprep.subr.bf16.mxu0 0
        %560 = vmatpush1.bf16.msra.mxu0 0
        %561 = vmatprep.subr.bf16.mxu0 0
        %562 = vmatpush1.bf16.msra.mxu0 0
        %563 = vmatprep.subr.bf16.mxu0 0
        %564 = vmatpush1.bf16.msra.mxu0 0
        %565 = vmatprep.mubr.bf16.mxu0 0
        %566 = vmatmul.mubr.bf16.gmra.mrb[0].mxu0 %v332
        %v567 = vpop.f32.mrb[0].mxu0
        %v568 = vadd.f32 0.0, %v567
        %v569 = vpop.f32.mrb[0].mxu0
        %v570 = vpop.f32.mrb[0].mxu0
        %v571 = vpop.f32.mrb[0].mxu0
        %572 = vdwg.mxu0
        %v589 = vunpack.c.l.b16 %v365
        %v590 = vunpack.c.l.b16 %v366
        %v591 = vunpack.c.l.b16 %v367
        %v592 = vunpack.c.l.b16 %v368
        %v593 = vunpack.c.l.b16 %v369
        %v594 = vunpack.c.l.b16 %v370
        %v595 = vunpack.c.l.b16 %v371
        %v596 = vunpack.c.l.b16 %v372
        %v597 = vunpack.c.l.b16 %v373
        %v598 = vunpack.c.l.b16 %v374
        %v599 = vunpack.c.l.b16 %v375
        %v600 = vunpack.c.l.b16 %v376
        %v601 = vunpack.c.l.b16 %v377
        %v602 = vunpack.c.l.b16 %v378
        %v603 = vunpack.c.l.b16 %v379
        %v604 = vunpack.c.l.b16 %v380
        %v605 = vpack.c.b16 %v590, %v589
        %v606 = vpack.c.b16 %v592, %v591
        %v607 = vpack.c.b16 %v594, %v593
        %v608 = vpack.c.b16 %v596, %v595
        %v609 = vpack.c.b16 %v598, %v597
        %v610 = vpack.c.b16 %v600, %v599
        %v611 = vpack.c.b16 %v602, %v601
        %v612 = vpack.c.b16 %v604, %v603
        %621 = vmatprep.subr.bf16.mxu0 0
        %622 = vmatpush1.bf16.msra.mxu0 %v605
        %623 = vmatprep.subr.bf16.mxu0 0
        %624 = vmatpush1.bf16.msra.mxu0 %v606
        %625 = vmatprep.subr.bf16.mxu0 0
        %626 = vmatpush1.bf16.msra.mxu0 %v607
        %627 = vmatprep.subr.bf16.mxu0 0
        %628 = vmatpush1.bf16.msra.mxu0 %v608
        %629 = vmatprep.subr.bf16.mxu0 0
        %630 = vmatpush1.bf16.msra.mxu0 %v609
        %631 = vmatprep.subr.bf16.mxu0 0
        %632 = vmatpush1.bf16.msra.mxu0 %v610
        %633 = vmatprep.subr.bf16.mxu0 0
        %634 = vmatpush1.bf16.msra.mxu0 %v611
        %635 = vmatprep.subr.bf16.mxu0 0
        %636 = vmatpush1.bf16.msra.mxu0 %v612
        %637 = vmatprep.subr.bf16.mxu0 0
        %638 = vmatpush1.bf16.msra.mxu0 0
        %639 = vmatprep.subr.bf16.mxu0 0
        %640 = vmatpush1.bf16.msra.mxu0 0
        %641 = vmatprep.subr.bf16.mxu0 0
        %642 = vmatpush1.bf16.msra.mxu0 0
        %643 = vmatprep.subr.bf16.mxu0 0
        %644 = vmatpush1.bf16.msra.mxu0 0
        %645 = vmatprep.subr.bf16.mxu0 0
        %646 = vmatpush1.bf16.msra.mxu0 0
        %647 = vmatprep.subr.bf16.mxu0 0
        %648 = vmatpush1.bf16.msra.mxu0 0
        %649 = vmatprep.subr.bf16.mxu0 0
        %650 = vmatpush1.bf16.msra.mxu0 0
        %651 = vmatprep.subr.bf16.mxu0 0
        %652 = vmatpush1.bf16.msra.mxu0 0
        %653 = vmatprep.mubr.bf16.mxu0 0
        %654 = vmatmul.mubr.bf16.gmra.mrb[0].mxu0 %v332
        %v655 = vpop.f32.mrb[0].mxu0
        %v656 = vadd.f32 0.0, %v655
        %v657 = vpop.f32.mrb[0].mxu0
        %v658 = vpop.f32.mrb[0].mxu0
        %v659 = vpop.f32.mrb[0].mxu0
        %660 = vdwg.mxu0
        %v677 = vunpack.c.l.b16 %v381
        %v678 = vunpack.c.l.b16 %v382
        %v679 = vunpack.c.l.b16 %v383
        %v680 = vunpack.c.l.b16 %v384
        %v681 = vunpack.c.l.b16 %v385
        %v682 = vunpack.c.l.b16 %v386
        %v683 = vunpack.c.l.b16 %v387
        %v684 = vunpack.c.l.b16 %v388
        %v685 = vunpack.c.l.b16 %v389
        %v686 = vunpack.c.l.b16 %v390
        %v687 = vunpack.c.l.b16 %v391
        %v688 = vunpack.c.l.b16 %v392
        %v689 = vunpack.c.l.b16 %v393
        %v690 = vunpack.c.l.b16 %v394
        %v691 = vunpack.c.l.b16 %v395
        %v692 = vunpack.c.l.b16 %v396
        %v693 = vpack.c.b16 %v678, %v677
        %v694 = vpack.c.b16 %v680, %v679
        %v695 = vpack.c.b16 %v682, %v681
        %v696 = vpack.c.b16 %v684, %v683
        %v697 = vpack.c.b16 %v686, %v685
        %v698 = vpack.c.b16 %v688, %v687
        %v699 = vpack.c.b16 %v690, %v689
        %v700 = vpack.c.b16 %v692, %v691
        %709 = vmatprep.subr.bf16.mxu0 0
        %710 = vmatpush1.bf16.msra.mxu0 %v693
        %711 = vmatprep.subr.bf16.mxu0 0
        %712 = vmatpush1.bf16.msra.mxu0 %v694
        %713 = vmatprep.subr.bf16.mxu0 0
        %714 = vmatpush1.bf16.msra.mxu0 %v695
        %715 = vmatprep.subr.bf16.mxu0 0
        %716 = vmatpush1.bf16.msra.mxu0 %v696
        %717 = vmatprep.subr.bf16.mxu0 0
        %718 = vmatpush1.bf16.msra.mxu0 %v697
        %719 = vmatprep.subr.bf16.mxu0 0
        %720 = vmatpush1.bf16.msra.mxu0 %v698
        %721 = vmatprep.subr.bf16.mxu0 0
        %722 = vmatpush1.bf16.msra.mxu0 %v699
        %723 = vmatprep.subr.bf16.mxu0 0
        %724 = vmatpush1.bf16.msra.mxu0 %v700
        %725 = vmatprep.subr.bf16.mxu0 0
        %726 = vmatpush1.bf16.msra.mxu0 0
        %727 = vmatprep.subr.bf16.mxu0 0
        %728 = vmatpush1.bf16.msra.mxu0 0
        %729 = vmatprep.subr.bf16.mxu0 0
        %730 = vmatpush1.bf16.msra.mxu0 0
        %731 = vmatprep.subr.bf16.mxu0 0
        %732 = vmatpush1.bf16.msra.mxu0 0
        %733 = vmatprep.subr.bf16.mxu0 0
        %734 = vmatpush1.bf16.msra.mxu0 0
        %735 = vmatprep.subr.bf16.mxu0 0
        %736 = vmatpush1.bf16.msra.mxu0 0
        %737 = vmatprep.subr.bf16.mxu0 0
        %738 = vmatpush1.bf16.msra.mxu0 0
        %739 = vmatprep.subr.bf16.mxu0 0
        %740 = vmatpush1.bf16.msra.mxu0 0
        %741 = vmatprep.mubr.bf16.mxu0 0
        %742 = vmatmul.mubr.bf16.gmra.mrb[0].mxu0 %v332
        %v743 = vpop.f32.mrb[0].mxu0
        %v744 = vadd.f32 0.0, %v743
        %v745 = vpop.f32.mrb[0].mxu0
        %v746 = vpop.f32.mrb[0].mxu0
        %v747 = vpop.f32.mrb[0].mxu0
        %748 = vdwg.mxu0
        %v749 = vld [vmem:[%s4] sm:$0xf]
        %v750 = vld [vmem:[%s4 + $0x4] sm:$0xf]
        %v751 = vld [vmem:[%s4 + $0x8] sm:$0xf]
        %v752 = vld [vmem:[%s4 + $0xc] sm:$0xf]
        %v753 = vld [vmem:[%s4 + $0x10] sm:$0xf]
        %v754 = vld [vmem:[%s4 + $0x14] sm:$0xf]
        %v755 = vld [vmem:[%s4 + $0x18] sm:$0xf]
        %v756 = vld [vmem:[%s4 + $0x1c] sm:$0xf]
        %v757 = vld [vmem:[%s4 + $0x20] sm:$0xf]
        %v758 = vld [vmem:[%s4 + $0x24] sm:$0xf]
        %v759 = vld [vmem:[%s4 + $0x28] sm:$0xf]
        %v760 = vld [vmem:[%s4 + $0x2c] sm:$0xf]
        %v761 = vld [vmem:[%s4 + $0x30] sm:$0xf]
        %v762 = vld [vmem:[%s4 + $0x34] sm:$0xf]
        %v763 = vld [vmem:[%s4 + $0x38] sm:$0xf]
        %v764 = vld [vmem:[%s4 + $0x3c] sm:$0xf]
        %v765 = vld [vmem:[%s4 + $0x40] sm:$0xf]
        %v766 = vld [vmem:[%s4 + $0x44] sm:$0xf]
        %v767 = vld [vmem:[%s4 + $0x48] sm:$0xf]
        %v768 = vld [vmem:[%s4 + $0x4c] sm:$0xf]
        %v769 = vld [vmem:[%s4 + $0x50] sm:$0xf]
        %v770 = vld [vmem:[%s4 + $0x54] sm:$0xf]
        %v771 = vld [vmem:[%s4 + $0x58] sm:$0xf]
        %v772 = vld [vmem:[%s4 + $0x5c] sm:$0xf]
        %v773 = vld [vmem:[%s4 + $0x60] sm:$0xf]
        %v774 = vld [vmem:[%s4 + $0x64] sm:$0xf]
        %v775 = vld [vmem:[%s4 + $0x68] sm:$0xf]
        %v776 = vld [vmem:[%s4 + $0x6c] sm:$0xf]
        %v777 = vld [vmem:[%s4 + $0x70] sm:$0xf]
        %v778 = vld [vmem:[%s4 + $0x74] sm:$0xf]
        %v779 = vld [vmem:[%s4 + $0x78] sm:$0xf]
        %v780 = vld [vmem:[%s4 + $0x7c] sm:$0xf]
        %v781 = vld [vmem:[%s4 + $0x80] sm:$0xf]
        %v782 = vld [vmem:[%s4 + $0x84] sm:$0xf]
        %v783 = vld [vmem:[%s4 + $0x88] sm:$0xf]
        %v784 = vld [vmem:[%s4 + $0x8c] sm:$0xf]
        %v785 = vld [vmem:[%s4 + $0x90] sm:$0xf]
        %v786 = vld [vmem:[%s4 + $0x94] sm:$0xf]
        %v787 = vld [vmem:[%s4 + $0x98] sm:$0xf]
        %v788 = vld [vmem:[%s4 + $0x9c] sm:$0xf]
        %v789 = vld [vmem:[%s4 + $0xa0] sm:$0xf]
        %v790 = vld [vmem:[%s4 + $0xa4] sm:$0xf]
        %v791 = vld [vmem:[%s4 + $0xa8] sm:$0xf]
        %v792 = vld [vmem:[%s4 + $0xac] sm:$0xf]
        %v793 = vld [vmem:[%s4 + $0xb0] sm:$0xf]
        %v794 = vld [vmem:[%s4 + $0xb4] sm:$0xf]
        %v795 = vld [vmem:[%s4 + $0xb8] sm:$0xf]
        %v796 = vld [vmem:[%s4 + $0xbc] sm:$0xf]
        %v797 = vld [vmem:[%s4 + $0xc0] sm:$0xf]
        %v798 = vld [vmem:[%s4 + $0xc4] sm:$0xf]
        %v799 = vld [vmem:[%s4 + $0xc8] sm:$0xf]
        %v800 = vld [vmem:[%s4 + $0xcc] sm:$0xf]
        %v801 = vld [vmem:[%s4 + $0xd0] sm:$0xf]
        %v802 = vld [vmem:[%s4 + $0xd4] sm:$0xf]
        %v803 = vld [vmem:[%s4 + $0xd8] sm:$0xf]
        %v804 = vld [vmem:[%s4 + $0xdc] sm:$0xf]
        %v805 = vld [vmem:[%s4 + $0xe0] sm:$0xf]
        %v806 = vld [vmem:[%s4 + $0xe4] sm:$0xf]
        %v807 = vld [vmem:[%s4 + $0xe8] sm:$0xf]
        %v808 = vld [vmem:[%s4 + $0xec] sm:$0xf]
        %v809 = vld [vmem:[%s4 + $0xf0] sm:$0xf]
        %v810 = vld [vmem:[%s4 + $0xf4] sm:$0xf]
        %v811 = vld [vmem:[%s4 + $0xf8] sm:$0xf]
        %v812 = vld [vmem:[%s4 + $0xfc] sm:$0xf]
        %v829 = vunpack.c.l.b16 %v749
        %v830 = vunpack.c.l.b16 %v750
        %v831 = vunpack.c.l.b16 %v751
        %v832 = vunpack.c.l.b16 %v752
        %v833 = vunpack.c.l.b16 %v753
        %v834 = vunpack.c.l.b16 %v754
        %v835 = vunpack.c.l.b16 %v755
        %v836 = vunpack.c.l.b16 %v756
        %v837 = vunpack.c.l.b16 %v757
        %v838 = vunpack.c.l.b16 %v758
        %v839 = vunpack.c.l.b16 %v759
        %v840 = vunpack.c.l.b16 %v760
        %v841 = vunpack.c.l.b16 %v761
        %v842 = vunpack.c.l.b16 %v762
        %v843 = vunpack.c.l.b16 %v763
        %v844 = vunpack.c.l.b16 %v764
        %v845 = vpack.c.b16 %v830, %v829
        %v846 = vpack.c.b16 %v832, %v831
        %v847 = vpack.c.b16 %v834, %v833
        %v848 = vpack.c.b16 %v836, %v835
        %v849 = vpack.c.b16 %v838, %v837
        %v850 = vpack.c.b16 %v840, %v839
        %v851 = vpack.c.b16 %v842, %v841
        %v852 = vpack.c.b16 %v844, %v843
        %861 = vmatprep.subr.bf16.mxu0 0
        %862 = vmatpush1.bf16.msra.mxu0 %v845
        %863 = vmatprep.subr.bf16.mxu0 0
        %864 = vmatpush1.bf16.msra.mxu0 %v846
        %865 = vmatprep.subr.bf16.mxu0 0
        %866 = vmatpush1.bf16.msra.mxu0 %v847
        %867 = vmatprep.subr.bf16.mxu0 0
        %868 = vmatpush1.bf16.msra.mxu0 %v848
        %869 = vmatprep.subr.bf16.mxu0 0
        %870 = vmatpush1.bf16.msra.mxu0 %v849
        %871 = vmatprep.subr.bf16.mxu0 0
        %872 = vmatpush1.bf16.msra.mxu0 %v850
        %873 = vmatprep.subr.bf16.mxu0 0
        %874 = vmatpush1.bf16.msra.mxu0 %v851
        %875 = vmatprep.subr.bf16.mxu0 0
        %876 = vmatpush1.bf16.msra.mxu0 %v852
        %877 = vmatprep.subr.bf16.mxu0 0
        %878 = vmatpush1.bf16.msra.mxu0 0
        %879 = vmatprep.subr.bf16.mxu0 0
        %880 = vmatpush1.bf16.msra.mxu0 0
        %881 = vmatprep.subr.bf16.mxu0 0
        %882 = vmatpush1.bf16.msra.mxu0 0
        %883 = vmatprep.subr.bf16.mxu0 0
        %884 = vmatpush1.bf16.msra.mxu0 0
        %885 = vmatprep.subr.bf16.mxu0 0
        %886 = vmatpush1.bf16.msra.mxu0 0
        %887 = vmatprep.subr.bf16.mxu0 0
        %888 = vmatpush1.bf16.msra.mxu0 0
        %889 = vmatprep.subr.bf16.mxu0 0
        %890 = vmatpush1.bf16.msra.mxu0 0
        %891 = vmatprep.subr.bf16.mxu0 0
        %892 = vmatpush1.bf16.msra.mxu0 0
        %893 = vmatprep.mubr.bf16.mxu0 0
        %894 = vmatmul.mubr.bf16.gmra.mrb[0].mxu0 %v332
        %v895 = vpop.f32.mrb[0].mxu0
        %v896 = vadd.f32 0.0, %v895
        %v897 = vpop.f32.mrb[0].mxu0
        %v898 = vpop.f32.mrb[0].mxu0
        %v899 = vpop.f32.mrb[0].mxu0
        %900 = vdwg.mxu0
        %v917 = vunpack.c.l.b16 %v765
        %v918 = vunpack.c.l.b16 %v766
        %v919 = vunpack.c.l.b16 %v767
        %v920 = vunpack.c.l.b16 %v768
        %v921 = vunpack.c.l.b16 %v769
        %v922 = vunpack.c.l.b16 %v770
        %v923 = vunpack.c.l.b16 %v771
        %v924 = vunpack.c.l.b16 %v772
        %v925 = vunpack.c.l.b16 %v773
        %v926 = vunpack.c.l.b16 %v774
        %v927 = vunpack.c.l.b16 %v775
        %v928 = vunpack.c.l.b16 %v776
        %v929 = vunpack.c.l.b16 %v777
        %v930 = vunpack.c.l.b16 %v778
        %v931 = vunpack.c.l.b16 %v779
        %v932 = vunpack.c.l.b16 %v780
        %v933 = vpack.c.b16 %v918, %v917
        %v934 = vpack.c.b16 %v920, %v919
        %v935 = vpack.c.b16 %v922, %v921
        %v936 = vpack.c.b16 %v924, %v923
        %v937 = vpack.c.b16 %v926, %v925
        %v938 = vpack.c.b16 %v928, %v927
        %v939 = vpack.c.b16 %v930, %v929
        %v940 = vpack.c.b16 %v932, %v931
        %949 = vmatprep.subr.bf16.mxu0 0
        %950 = vmatpush1.bf16.msra.mxu0 %v933
        %951 = vmatprep.subr.bf16.mxu0 0
        %952 = vmatpush1.bf16.msra.mxu0 %v934
        %953 = vmatprep.subr.bf16.mxu0 0
        %954 = vmatpush1.bf16.msra.mxu0 %v935
        %955 = vmatprep.subr.bf16.mxu0 0
        %956 = vmatpush1.bf16.msra.mxu0 %v936
        %957 = vmatprep.subr.bf16.mxu0 0
        %958 = vmatpush1.bf16.msra.mxu0 %v937
        %959 = vmatprep.subr.bf16.mxu0 0
        %960 = vmatpush1.bf16.msra.mxu0 %v938
        %961 = vmatprep.subr.bf16.mxu0 0
        %962 = vmatpush1.bf16.msra.mxu0 %v939
        %963 = vmatprep.subr.bf16.mxu0 0
        %964 = vmatpush1.bf16.msra.mxu0 %v940
        %965 = vmatprep.subr.bf16.mxu0 0
        %966 = vmatpush1.bf16.msra.mxu0 0
        %967 = vmatprep.subr.bf16.mxu0 0
        %968 = vmatpush1.bf16.msra.mxu0 0
        %969 = vmatprep.subr.bf16.mxu0 0
        %970 = vmatpush1.bf16.msra.mxu0 0
        %971 = vmatprep.subr.bf16.mxu0 0
        %972 = vmatpush1.bf16.msra.mxu0 0
        %973 = vmatprep.subr.bf16.mxu0 0
        %974 = vmatpush1.bf16.msra.mxu0 0
        %975 = vmatprep.subr.bf16.mxu0 0
        %976 = vmatpush1.bf16.msra.mxu0 0
        %977 = vmatprep.subr.bf16.mxu0 0
        %978 = vmatpush1.bf16.msra.mxu0 0
        %979 = vmatprep.subr.bf16.mxu0 0
        %980 = vmatpush1.bf16.msra.mxu0 0
        %981 = vmatprep.mubr.bf16.mxu0 0
        %982 = vmatmul.mubr.bf16.gmra.mrb[0].mxu0 %v332
        %v983 = vpop.f32.mrb[0].mxu0
        %v984 = vadd.f32 0.0, %v983
        %v985 = vpop.f32.mrb[0].mxu0
        %v986 = vpop.f32.mrb[0].mxu0
        %v987 = vpop.f32.mrb[0].mxu0
        %988 = vdwg.mxu0
        %v1005 = vunpack.c.l.b16 %v781
        %v1006 = vunpack.c.l.b16 %v782
        %v1007 = vunpack.c.l.b16 %v783
        %v1008 = vunpack.c.l.b16 %v784
        %v1009 = vunpack.c.l.b16 %v785
        %v1010 = vunpack.c.l.b16 %v786
        %v1011 = vunpack.c.l.b16 %v787
        %v1012 = vunpack.c.l.b16 %v788
        %v1013 = vunpack.c.l.b16 %v789
        %v1014 = vunpack.c.l.b16 %v790
        %v1015 = vunpack.c.l.b16 %v791
        %v1016 = vunpack.c.l.b16 %v792
        %v1017 = vunpack.c.l.b16 %v793
        %v1018 = vunpack.c.l.b16 %v794
        %v1019 = vunpack.c.l.b16 %v795
        %v1020 = vunpack.c.l.b16 %v796
        %v1021 = vpack.c.b16 %v1006, %v1005
        %v1022 = vpack.c.b16 %v1008, %v1007
        %v1023 = vpack.c.b16 %v1010, %v1009
        %v1024 = vpack.c.b16 %v1012, %v1011
        %v1025 = vpack.c.b16 %v1014, %v1013
        %v1026 = vpack.c.b16 %v1016, %v1015
        %v1027 = vpack.c.b16 %v1018, %v1017
        %v1028 = vpack.c.b16 %v1020, %v1019
        %1037 = vmatprep.subr.bf16.mxu0 0
        %1038 = vmatpush1.bf16.msra.mxu0 %v1021
        %1039 = vmatprep.subr.bf16.mxu0 0
        %1040 = vmatpush1.bf16.msra.mxu0 %v1022
        %1041 = vmatprep.subr.bf16.mxu0 0
        %1042 = vmatpush1.bf16.msra.mxu0 %v1023
        %1043 = vmatprep.subr.bf16.mxu0 0
        %1044 = vmatpush1.bf16.msra.mxu0 %v1024
        %1045 = vmatprep.subr.bf16.mxu0 0
        %1046 = vmatpush1.bf16.msra.mxu0 %v1025
        %1047 = vmatprep.subr.bf16.mxu0 0
        %1048 = vmatpush1.bf16.msra.mxu0 %v1026
        %1049 = vmatprep.subr.bf16.mxu0 0
        %1050 = vmatpush1.bf16.msra.mxu0 %v1027
        %1051 = vmatprep.subr.bf16.mxu0 0
        %1052 = vmatpush1.bf16.msra.mxu0 %v1028
        %1053 = vmatprep.subr.bf16.mxu0 0
        %1054 = vmatpush1.bf16.msra.mxu0 0
        %1055 = vmatprep.subr.bf16.mxu0 0
        %1056 = vmatpush1.bf16.msra.mxu0 0
        %1057 = vmatprep.subr.bf16.mxu0 0
        %1058 = vmatpush1.bf16.msra.mxu0 0
        %1059 = vmatprep.subr.bf16.mxu0 0
        %1060 = vmatpush1.bf16.msra.mxu0 0
        %1061 = vmatprep.subr.bf16.mxu0 0
        %1062 = vmatpush1.bf16.msra.mxu0 0
        %1063 = vmatprep.subr.bf16.mxu0 0
        %1064 = vmatpush1.bf16.msra.mxu0 0
        %1065 = vmatprep.subr.bf16.mxu0 0
        %1066 = vmatpush1.bf16.msra.mxu0 0
        %1067 = vmatprep.subr.bf16.mxu0 0
        %1068 = vmatpush1.bf16.msra.mxu0 0
        %1069 = vmatprep.mubr.bf16.mxu0 0
        %1070 = vmatmul.mubr.bf16.gmra.mrb[0].mxu0 %v332
        %v1071 = vpop.f32.mrb[0].mxu0
        %v1072 = vadd.f32 0.0, %v1071
        %v1073 = vpop.f32.mrb[0].mxu0
        %v1074 = vpop.f32.mrb[0].mxu0
        %v1075 = vpop.f32.mrb[0].mxu0
        %1076 = vdwg.mxu0
        %v1093 = vunpack.c.l.b16 %v797
        %v1094 = vunpack.c.l.b16 %v798
        %v1095 = vunpack.c.l.b16 %v799
        %v1096 = vunpack.c.l.b16 %v800
        %v1097 = vunpack.c.l.b16 %v801
        %v1098 = vunpack.c.l.b16 %v802
        %v1099 = vunpack.c.l.b16 %v803
        %v1100 = vunpack.c.l.b16 %v804
        %v1101 = vunpack.c.l.b16 %v805
        %v1102 = vunpack.c.l.b16 %v806
        %v1103 = vunpack.c.l.b16 %v807
        %v1104 = vunpack.c.l.b16 %v808
        %v1105 = vunpack.c.l.b16 %v809
        %v1106 = vunpack.c.l.b16 %v810
        %v1107 = vunpack.c.l.b16 %v811
        %v1108 = vunpack.c.l.b16 %v812
        %v1109 = vpack.c.b16 %v1094, %v1093
        %v1110 = vpack.c.b16 %v1096, %v1095
        %v1111 = vpack.c.b16 %v1098, %v1097
        %v1112 = vpack.c.b16 %v1100, %v1099
        %v1113 = vpack.c.b16 %v1102, %v1101
        %v1114 = vpack.c.b16 %v1104, %v1103
        %v1115 = vpack.c.b16 %v1106, %v1105
        %v1116 = vpack.c.b16 %v1108, %v1107
        %1125 = vmatprep.subr.bf16.mxu0 0
        %1126 = vmatpush1.bf16.msra.mxu0 %v1109
        %1127 = vmatprep.subr.bf16.mxu0 0
        %1128 = vmatpush1.bf16.msra.mxu0 %v1110
        %1129 = vmatprep.subr.bf16.mxu0 0
        %1130 = vmatpush1.bf16.msra.mxu0 %v1111
        %1131 = vmatprep.subr.bf16.mxu0 0
        %1132 = vmatpush1.bf16.msra.mxu0 %v1112
        %1133 = vmatprep.subr.bf16.mxu0 0
        %1134 = vmatpush1.bf16.msra.mxu0 %v1113
        %1135 = vmatprep.subr.bf16.mxu0 0
        %1136 = vmatpush1.bf16.msra.mxu0 %v1114
        %1137 = vmatprep.subr.bf16.mxu0 0
        %1138 = vmatpush1.bf16.msra.mxu0 %v1115
        %1139 = vmatprep.subr.bf16.mxu0 0
        %1140 = vmatpush1.bf16.msra.mxu0 %v1116
        %1141 = vmatprep.subr.bf16.mxu0 0
        %1142 = vmatpush1.bf16.msra.mxu0 0
        %1143 = vmatprep.subr.bf16.mxu0 0
        %1144 = vmatpush1.bf16.msra.mxu0 0
        %1145 = vmatprep.subr.bf16.mxu0 0
        %1146 = vmatpush1.bf16.msra.mxu0 0
        %1147 = vmatprep.subr.bf16.mxu0 0
        %1148 = vmatpush1.bf16.msra.mxu0 0
        %1149 = vmatprep.subr.bf16.mxu0 0
        %1150 = vmatpush1.bf16.msra.mxu0 0
        %1151 = vmatprep.subr.bf16.mxu0 0
        %1152 = vmatpush1.bf16.msra.mxu0 0
        %1153 = vmatprep.subr.bf16.mxu0 0
        %1154 = vmatpush1.bf16.msra.mxu0 0
        %1155 = vmatprep.subr.bf16.mxu0 0
        %1156 = vmatpush1.bf16.msra.mxu0 0
        %1157 = vmatprep.mubr.bf16.mxu0 0
        %1158 = vmatmul.mubr.bf16.gmra.mrb[0].mxu0 %v332
        %v1159 = vpop.f32.mrb[0].mxu0
        %v1160 = vadd.f32 0.0, %v1159
        %v1161 = vpop.f32.mrb[0].mxu0
        %v1162 = vpop.f32.mrb[0].mxu0
        %v1163 = vpop.f32.mrb[0].mxu0
        %1164 = vdwg.mxu0
        %v1165 = vld [vmem:[%s5] sm:$0xf]
        %v1166 = vld [vmem:[%s5 + $0x4] sm:$0xf]
        %v1167 = vld [vmem:[%s5 + $0x8] sm:$0xf]
        %v1168 = vld [vmem:[%s5 + $0xc] sm:$0xf]
        %v1169 = vld [vmem:[%s5 + $0x10] sm:$0xf]
        %v1170 = vld [vmem:[%s5 + $0x14] sm:$0xf]
        %v1171 = vld [vmem:[%s5 + $0x18] sm:$0xf]
        %v1172 = vld [vmem:[%s5 + $0x1c] sm:$0xf]
        %v1173 = vld [vmem:[%s5 + $0x20] sm:$0xf]
        %v1174 = vld [vmem:[%s5 + $0x24] sm:$0xf]
        %v1175 = vld [vmem:[%s5 + $0x28] sm:$0xf]
        %v1176 = vld [vmem:[%s5 + $0x2c] sm:$0xf]
        %v1177 = vld [vmem:[%s5 + $0x30] sm:$0xf]
        %v1178 = vld [vmem:[%s5 + $0x34] sm:$0xf]
        %v1179 = vld [vmem:[%s5 + $0x38] sm:$0xf]
        %v1180 = vld [vmem:[%s5 + $0x3c] sm:$0xf]
        %v1181 = vld [vmem:[%s5 + $0x40] sm:$0xf]
        %v1182 = vld [vmem:[%s5 + $0x44] sm:$0xf]
        %v1183 = vld [vmem:[%s5 + $0x48] sm:$0xf]
        %v1184 = vld [vmem:[%s5 + $0x4c] sm:$0xf]
        %v1185 = vld [vmem:[%s5 + $0x50] sm:$0xf]
        %v1186 = vld [vmem:[%s5 + $0x54] sm:$0xf]
        %v1187 = vld [vmem:[%s5 + $0x58] sm:$0xf]
        %v1188 = vld [vmem:[%s5 + $0x5c] sm:$0xf]
        %v1189 = vld [vmem:[%s5 + $0x60] sm:$0xf]
        %v1190 = vld [vmem:[%s5 + $0x64] sm:$0xf]
        %v1191 = vld [vmem:[%s5 + $0x68] sm:$0xf]
        %v1192 = vld [vmem:[%s5 + $0x6c] sm:$0xf]
        %v1193 = vld [vmem:[%s5 + $0x70] sm:$0xf]
        %v1194 = vld [vmem:[%s5 + $0x74] sm:$0xf]
        %v1195 = vld [vmem:[%s5 + $0x78] sm:$0xf]
        %v1196 = vld [vmem:[%s5 + $0x7c] sm:$0xf]
        %v1197 = vld [vmem:[%s5 + $0x80] sm:$0xf]
        %v1198 = vld [vmem:[%s5 + $0x84] sm:$0xf]
        %v1199 = vld [vmem:[%s5 + $0x88] sm:$0xf]
        %v1200 = vld [vmem:[%s5 + $0x8c] sm:$0xf]
        %v1201 = vld [vmem:[%s5 + $0x90] sm:$0xf]
        %v1202 = vld [vmem:[%s5 + $0x94] sm:$0xf]
        %v1203 = vld [vmem:[%s5 + $0x98] sm:$0xf]
        %v1204 = vld [vmem:[%s5 + $0x9c] sm:$0xf]
        %v1205 = vld [vmem:[%s5 + $0xa0] sm:$0xf]
        %v1206 = vld [vmem:[%s5 + $0xa4] sm:$0xf]
        %v1207 = vld [vmem:[%s5 + $0xa8] sm:$0xf]
        %v1208 = vld [vmem:[%s5 + $0xac] sm:$0xf]
        %v1209 = vld [vmem:[%s5 + $0xb0] sm:$0xf]
        %v1210 = vld [vmem:[%s5 + $0xb4] sm:$0xf]
        %v1211 = vld [vmem:[%s5 + $0xb8] sm:$0xf]
        %v1212 = vld [vmem:[%s5 + $0xbc] sm:$0xf]
        %v1213 = vld [vmem:[%s5 + $0xc0] sm:$0xf]
        %v1214 = vld [vmem:[%s5 + $0xc4] sm:$0xf]
        %v1215 = vld [vmem:[%s5 + $0xc8] sm:$0xf]
        %v1216 = vld [vmem:[%s5 + $0xcc] sm:$0xf]
        %v1217 = vld [vmem:[%s5 + $0xd0] sm:$0xf]
        %v1218 = vld [vmem:[%s5 + $0xd4] sm:$0xf]
        %v1219 = vld [vmem:[%s5 + $0xd8] sm:$0xf]
        %v1220 = vld [vmem:[%s5 + $0xdc] sm:$0xf]
        %v1221 = vld [vmem:[%s5 + $0xe0] sm:$0xf]
        %v1222 = vld [vmem:[%s5 + $0xe4] sm:$0xf]
        %v1223 = vld [vmem:[%s5 + $0xe8] sm:$0xf]
        %v1224 = vld [vmem:[%s5 + $0xec] sm:$0xf]
        %v1225 = vld [vmem:[%s5 + $0xf0] sm:$0xf]
        %v1226 = vld [vmem:[%s5 + $0xf4] sm:$0xf]
        %v1227 = vld [vmem:[%s5 + $0xf8] sm:$0xf]
        %v1228 = vld [vmem:[%s5 + $0xfc] sm:$0xf]
        %v1245 = vunpack.c.l.b16 %v1165
        %v1246 = vunpack.c.l.b16 %v1166
        %v1247 = vunpack.c.l.b16 %v1167
        %v1248 = vunpack.c.l.b16 %v1168
        %v1249 = vunpack.c.l.b16 %v1169
        %v1250 = vunpack.c.l.b16 %v1170
        %v1251 = vunpack.c.l.b16 %v1171
        %v1252 = vunpack.c.l.b16 %v1172
        %v1253 = vunpack.c.l.b16 %v1173
        %v1254 = vunpack.c.l.b16 %v1174
        %v1255 = vunpack.c.l.b16 %v1175
        %v1256 = vunpack.c.l.b16 %v1176
        %v1257 = vunpack.c.l.b16 %v1177
        %v1258 = vunpack.c.l.b16 %v1178
        %v1259 = vunpack.c.l.b16 %v1179
        %v1260 = vunpack.c.l.b16 %v1180
        %v1261 = vpack.c.b16 %v1246, %v1245
        %v1262 = vpack.c.b16 %v1248, %v1247
        %v1263 = vpack.c.b16 %v1250, %v1249
        %v1264 = vpack.c.b16 %v1252, %v1251
        %v1265 = vpack.c.b16 %v1254, %v1253
        %v1266 = vpack.c.b16 %v1256, %v1255
        %v1267 = vpack.c.b16 %v1258, %v1257
        %v1268 = vpack.c.b16 %v1260, %v1259
        %1277 = vmatprep.subr.bf16.mxu0 0
        %1278 = vmatpush1.bf16.msra.mxu0 %v1261
        %1279 = vmatprep.subr.bf16.mxu0 0
        %1280 = vmatpush1.bf16.msra.mxu0 %v1262
        %1281 = vmatprep.subr.bf16.mxu0 0
        %1282 = vmatpush1.bf16.msra.mxu0 %v1263
        %1283 = vmatprep.subr.bf16.mxu0 0
        %1284 = vmatpush1.bf16.msra.mxu0 %v1264
        %1285 = vmatprep.subr.bf16.mxu0 0
        %1286 = vmatpush1.bf16.msra.mxu0 %v1265
        %1287 = vmatprep.subr.bf16.mxu0 0
        %1288 = vmatpush1.bf16.msra.mxu0 %v1266
        %1289 = vmatprep.subr.bf16.mxu0 0
        %1290 = vmatpush1.bf16.msra.mxu0 %v1267
        %1291 = vmatprep.subr.bf16.mxu0 0
        %1292 = vmatpush1.bf16.msra.mxu0 %v1268
        %1293 = vmatprep.subr.bf16.mxu0 0
        %1294 = vmatpush1.bf16.msra.mxu0 0
        %1295 = vmatprep.subr.bf16.mxu0 0
        %1296 = vmatpush1.bf16.msra.mxu0 0
        %1297 = vmatprep.subr.bf16.mxu0 0
        %1298 = vmatpush1.bf16.msra.mxu0 0
        %1299 = vmatprep.subr.bf16.mxu0 0
        %1300 = vmatpush1.bf16.msra.mxu0 0
        %1301 = vmatprep.subr.bf16.mxu0 0
        %1302 = vmatpush1.bf16.msra.mxu0 0
        %1303 = vmatprep.subr.bf16.mxu0 0
        %1304 = vmatpush1.bf16.msra.mxu0 0
        %1305 = vmatprep.subr.bf16.mxu0 0
        %1306 = vmatpush1.bf16.msra.mxu0 0
        %1307 = vmatprep.subr.bf16.mxu0 0
        %1308 = vmatpush1.bf16.msra.mxu0 0
        %1309 = vmatprep.mubr.bf16.mxu0 0
        %1310 = vmatmul.mubr.bf16.gmra.mrb[0].mxu0 %v332
        %v1311 = vpop.f32.mrb[0].mxu0
        %v1312 = vadd.f32 0.0, %v1311
        %v1313 = vpop.f32.mrb[0].mxu0
        %v1314 = vpop.f32.mrb[0].mxu0
        %v1315 = vpop.f32.mrb[0].mxu0
        %1316 = vdwg.mxu0
        %v1333 = vunpack.c.l.b16 %v1181
        %v1334 = vunpack.c.l.b16 %v1182
        %v1335 = vunpack.c.l.b16 %v1183
        %v1336 = vunpack.c.l.b16 %v1184
        %v1337 = vunpack.c.l.b16 %v1185
        %v1338 = vunpack.c.l.b16 %v1186
        %v1339 = vunpack.c.l.b16 %v1187
        %v1340 = vunpack.c.l.b16 %v1188
        %v1341 = vunpack.c.l.b16 %v1189
        %v1342 = vunpack.c.l.b16 %v1190
        %v1343 = vunpack.c.l.b16 %v1191
        %v1344 = vunpack.c.l.b16 %v1192
        %v1345 = vunpack.c.l.b16 %v1193
        %v1346 = vunpack.c.l.b16 %v1194
        %v1347 = vunpack.c.l.b16 %v1195
        %v1348 = vunpack.c.l.b16 %v1196
        %v1349 = vpack.c.b16 %v1334, %v1333
        %v1350 = vpack.c.b16 %v1336, %v1335
        %v1351 = vpack.c.b16 %v1338, %v1337
        %v1352 = vpack.c.b16 %v1340, %v1339
        %v1353 = vpack.c.b16 %v1342, %v1341
        %v1354 = vpack.c.b16 %v1344, %v1343
        %v1355 = vpack.c.b16 %v1346, %v1345
        %v1356 = vpack.c.b16 %v1348, %v1347
        %1365 = vmatprep.subr.bf16.mxu0 0
        %1366 = vmatpush1.bf16.msra.mxu0 %v1349
        %1367 = vmatprep.subr.bf16.mxu0 0
        %1368 = vmatpush1.bf16.msra.mxu0 %v1350
        %1369 = vmatprep.subr.bf16.mxu0 0
        %1370 = vmatpush1.bf16.msra.mxu0 %v1351
        %1371 = vmatprep.subr.bf16.mxu0 0
        %1372 = vmatpush1.bf16.msra.mxu0 %v1352
        %1373 = vmatprep.subr.bf16.mxu0 0
        %1374 = vmatpush1.bf16.msra.mxu0 %v1353
        %1375 = vmatprep.subr.bf16.mxu0 0
        %1376 = vmatpush1.bf16.msra.mxu0 %v1354
        %1377 = vmatprep.subr.bf16.mxu0 0
        %1378 = vmatpush1.bf16.msra.mxu0 %v1355
        %1379 = vmatprep.subr.bf16.mxu0 0
        %1380 = vmatpush1.bf16.msra.mxu0 %v1356
        %1381 = vmatprep.subr.bf16.mxu0 0
        %1382 = vmatpush1.bf16.msra.mxu0 0
        %1383 = vmatprep.subr.bf16.mxu0 0
        %1384 = vmatpush1.bf16.msra.mxu0 0
        %1385 = vmatprep.subr.bf16.mxu0 0
        %1386 = vmatpush1.bf16.msra.mxu0 0
        %1387 = vmatprep.subr.bf16.mxu0 0
        %1388 = vmatpush1.bf16.msra.mxu0 0
        %1389 = vmatprep.subr.bf16.mxu0 0
        %1390 = vmatpush1.bf16.msra.mxu0 0
        %1391 = vmatprep.subr.bf16.mxu0 0
        %1392 = vmatpush1.bf16.msra.mxu0 0
        %1393 = vmatprep.subr.bf16.mxu0 0
        %1394 = vmatpush1.bf16.msra.mxu0 0
        %1395 = vmatprep.subr.bf16.mxu0 0
        %1396 = vmatpush1.bf16.msra.mxu0 0
        %1397 = vmatprep.mubr.bf16.mxu0 0
        %1398 = vmatmul.mubr.bf16.gmra.mrb[0].mxu0 %v332
        %v1399 = vpop.f32.mrb[0].mxu0
        %v1400 = vadd.f32 0.0, %v1399
        %v1401 = vpop.f32.mrb[0].mxu0
        %v1402 = vpop.f32.mrb[0].mxu0
        %v1403 = vpop.f32.mrb[0].mxu0
        %1404 = vdwg.mxu0
        %v1421 = vunpack.c.l.b16 %v1197
        %v1422 = vunpack.c.l.b16 %v1198
        %v1423 = vunpack.c.l.b16 %v1199
        %v1424 = vunpack.c.l.b16 %v1200
        %v1425 = vunpack.c.l.b16 %v1201
        %v1426 = vunpack.c.l.b16 %v1202
        %v1427 = vunpack.c.l.b16 %v1203
        %v1428 = vunpack.c.l.b16 %v1204
        %v1429 = vunpack.c.l.b16 %v1205
        %v1430 = vunpack.c.l.b16 %v1206
        %v1431 = vunpack.c.l.b16 %v1207
        %v1432 = vunpack.c.l.b16 %v1208
        %v1433 = vunpack.c.l.b16 %v1209
        %v1434 = vunpack.c.l.b16 %v1210
        %v1435 = vunpack.c.l.b16 %v1211
        %v1436 = vunpack.c.l.b16 %v1212
        %v1437 = vpack.c.b16 %v1422, %v1421
        %v1438 = vpack.c.b16 %v1424, %v1423
        %v1439 = vpack.c.b16 %v1426, %v1425
        %v1440 = vpack.c.b16 %v1428, %v1427
        %v1441 = vpack.c.b16 %v1430, %v1429
        %v1442 = vpack.c.b16 %v1432, %v1431
        %v1443 = vpack.c.b16 %v1434, %v1433
        %v1444 = vpack.c.b16 %v1436, %v1435
        %1453 = vmatprep.subr.bf16.mxu0 0
        %1454 = vmatpush1.bf16.msra.mxu0 %v1437
        %1455 = vmatprep.subr.bf16.mxu0 0
        %1456 = vmatpush1.bf16.msra.mxu0 %v1438
        %1457 = vmatprep.subr.bf16.mxu0 0
        %1458 = vmatpush1.bf16.msra.mxu0 %v1439
        %1459 = vmatprep.subr.bf16.mxu0 0
        %1460 = vmatpush1.bf16.msra.mxu0 %v1440
        %1461 = vmatprep.subr.bf16.mxu0 0
        %1462 = vmatpush1.bf16.msra.mxu0 %v1441
        %1463 = vmatprep.subr.bf16.mxu0 0
        %1464 = vmatpush1.bf16.msra.mxu0 %v1442
        %1465 = vmatprep.subr.bf16.mxu0 0
        %1466 = vmatpush1.bf16.msra.mxu0 %v1443
        %1467 = vmatprep.subr.bf16.mxu0 0
        %1468 = vmatpush1.bf16.msra.mxu0 %v1444
        %1469 = vmatprep.subr.bf16.mxu0 0
        %1470 = vmatpush1.bf16.msra.mxu0 0
        %1471 = vmatprep.subr.bf16.mxu0 0
        %1472 = vmatpush1.bf16.msra.mxu0 0
        %1473 = vmatprep.subr.bf16.mxu0 0
        %1474 = vmatpush1.bf16.msra.mxu0 0
        %1475 = vmatprep.subr.bf16.mxu0 0
        %1476 = vmatpush1.bf16.msra.mxu0 0
        %1477 = vmatprep.subr.bf16.mxu0 0
        %1478 = vmatpush1.bf16.msra.mxu0 0
        %1479 = vmatprep.subr.bf16.mxu0 0
        %1480 = vmatpush1.bf16.msra.mxu0 0
        %1481 = vmatprep.subr.bf16.mxu0 0
        %1482 = vmatpush1.bf16.msra.mxu0 0
        %1483 = vmatprep.subr.bf16.mxu0 0
        %1484 = vmatpush1.bf16.msra.mxu0 0
        %1485 = vmatprep.mubr.bf16.mxu0 0
        %1486 = vmatmul.mubr.bf16.gmra.mrb[0].mxu0 %v332
        %v1487 = vpop.f32.mrb[0].mxu0
        %v1488 = vadd.f32 0.0, %v1487
        %v1489 = vpop.f32.mrb[0].mxu0
        %v1490 = vpop.f32.mrb[0].mxu0
        %v1491 = vpop.f32.mrb[0].mxu0
        %1492 = vdwg.mxu0
        %v1509 = vunpack.c.l.b16 %v1213
        %v1510 = vunpack.c.l.b16 %v1214
        %v1511 = vunpack.c.l.b16 %v1215
        %v1512 = vunpack.c.l.b16 %v1216
        %v1513 = vunpack.c.l.b16 %v1217
        %v1514 = vunpack.c.l.b16 %v1218
        %v1515 = vunpack.c.l.b16 %v1219
        %v1516 = vunpack.c.l.b16 %v1220
        %v1517 = vunpack.c.l.b16 %v1221
        %v1518 = vunpack.c.l.b16 %v1222
        %v1519 = vunpack.c.l.b16 %v1223
        %v1520 = vunpack.c.l.b16 %v1224
        %v1521 = vunpack.c.l.b16 %v1225
        %v1522 = vunpack.c.l.b16 %v1226
        %v1523 = vunpack.c.l.b16 %v1227
        %v1524 = vunpack.c.l.b16 %v1228
        %v1525 = vpack.c.b16 %v1510, %v1509
        %v1526 = vpack.c.b16 %v1512, %v1511
        %v1527 = vpack.c.b16 %v1514, %v1513
        %v1528 = vpack.c.b16 %v1516, %v1515
        %v1529 = vpack.c.b16 %v1518, %v1517
        %v1530 = vpack.c.b16 %v1520, %v1519
        %v1531 = vpack.c.b16 %v1522, %v1521
        %v1532 = vpack.c.b16 %v1524, %v1523
        %1541 = vmatprep.subr.bf16.mxu0 0
        %1542 = vmatpush1.bf16.msra.mxu0 %v1525
        %1543 = vmatprep.subr.bf16.mxu0 0
        %1544 = vmatpush1.bf16.msra.mxu0 %v1526
        %1545 = vmatprep.subr.bf16.mxu0 0
        %1546 = vmatpush1.bf16.msra.mxu0 %v1527
        %1547 = vmatprep.subr.bf16.mxu0 0
        %1548 = vmatpush1.bf16.msra.mxu0 %v1528
        %1549 = vmatprep.subr.bf16.mxu0 0
        %1550 = vmatpush1.bf16.msra.mxu0 %v1529
        %1551 = vmatprep.subr.bf16.mxu0 0
        %1552 = vmatpush1.bf16.msra.mxu0 %v1530
        %1553 = vmatprep.subr.bf16.mxu0 0
        %1554 = vmatpush1.bf16.msra.mxu0 %v1531
        %1555 = vmatprep.subr.bf16.mxu0 0
        %1556 = vmatpush1.bf16.msra.mxu0 %v1532
        %1557 = vmatprep.subr.bf16.mxu0 0
        %1558 = vmatpush1.bf16.msra.mxu0 0
        %1559 = vmatprep.subr.bf16.mxu0 0
        %1560 = vmatpush1.bf16.msra.mxu0 0
        %1561 = vmatprep.subr.bf16.mxu0 0
        %1562 = vmatpush1.bf16.msra.mxu0 0
        %1563 = vmatprep.subr.bf16.mxu0 0
        %1564 = vmatpush1.bf16.msra.mxu0 0
        %1565 = vmatprep.subr.bf16.mxu0 0
        %1566 = vmatpush1.bf16.msra.mxu0 0
        %1567 = vmatprep.subr.bf16.mxu0 0
        %1568 = vmatpush1.bf16.msra.mxu0 0
        %1569 = vmatprep.subr.bf16.mxu0 0
        %1570 = vmatpush1.bf16.msra.mxu0 0
        %1571 = vmatprep.subr.bf16.mxu0 0
        %1572 = vmatpush1.bf16.msra.mxu0 0
        %1573 = vmatprep.mubr.bf16.mxu0 0
        %1574 = vmatmul.mubr.bf16.gmra.mrb[0].mxu0 %v332
        %v1575 = vpop.f32.mrb[0].mxu0
        %v1576 = vadd.f32 0.0, %v1575
        %v1577 = vpop.f32.mrb[0].mxu0
        %v1578 = vpop.f32.mrb[0].mxu0
        %v1579 = vpop.f32.mrb[0].mxu0
        %1580 = vdwg.mxu0
        %v1581 = vpack.c.bf16 %v480, %v480
        %v1582 = vpack.c.bf16 %v568, %v568
        %v1583 = vpack.c.bf16 %v656, %v656
        %v1584 = vpack.c.bf16 %v744, %v744
        %v1585 = vpack.c.bf16 %v896, %v896
        %v1586 = vpack.c.bf16 %v984, %v984
        %v1587 = vpack.c.bf16 %v1072, %v1072
        %v1588 = vpack.c.bf16 %v1160, %v1160
        %vm1589 = vcmask 130048
        %v1591 = vsel %vm1589, %v1581, 0
        %v1594 = vsel %vm1589, %v1585, 0
        %1596 = vmatprep.subr.bf16.mxu0 0
        %1597 = vmatpush1.bf16.xpose.msra.mxu0 %v1594
        %1598 = vmatprep.subr.bf16.mxu0 0
        %1599 = vmatpush1.bf16.xpose.msra.mxu0 0
        %1600 = vmatprep.subr.bf16.mxu0 0
        %1601 = vmatpush1.bf16.xpose.msra.mxu0 0
        %1602 = vmatprep.subr.bf16.mxu0 0
        %1603 = vmatpush1.bf16.xpose.msra.mxu0 0
        %1604 = vmatprep.subr.bf16.mxu0 0
        %1605 = vmatpush1.bf16.xpose.msra.mxu0 0
        %1606 = vmatprep.subr.bf16.mxu0 0
        %1607 = vmatpush1.bf16.xpose.msra.mxu0 0
        %1608 = vmatprep.subr.bf16.mxu0 0
        %1609 = vmatpush1.bf16.xpose.msra.mxu0 0
        %1610 = vmatprep.subr.bf16.mxu0 0
        %1611 = vmatpush1.bf16.xpose.msra.mxu0 0
        %1612 = vmatprep.subr.bf16.mxu0 0
        %1613 = vmatpush1.bf16.xpose.msra.mxu0 0
        %1614 = vmatprep.subr.bf16.mxu0 0
        %1615 = vmatpush1.bf16.xpose.msra.mxu0 0
        %1616 = vmatprep.subr.bf16.mxu0 0
        %1617 = vmatpush1.bf16.xpose.msra.mxu0 0
        %1618 = vmatprep.subr.bf16.mxu0 0
        %1619 = vmatpush1.bf16.xpose.msra.mxu0 0
        %1620 = vmatprep.subr.bf16.mxu0 0
        %1621 = vmatpush1.bf16.xpose.msra.mxu0 0
        %1622 = vmatprep.subr.bf16.mxu0 0
        %1623 = vmatpush1.bf16.xpose.msra.mxu0 0
        %1624 = vmatprep.subr.bf16.mxu0 0
        %1625 = vmatpush1.bf16.xpose.msra.mxu0 0
        %1626 = vmatprep.subr.bf16.mxu0 0
        %1627 = vmatpush1.bf16.xpose.msra.mxu0 0
        %1628 = vmatprep.mubr.bf16.mxu0 0
        %1629 = vmatmul.mubr.bf16.gmra.mrb[0].mxu0 %v1591
        %v1630 = vpop.f32.mrb[0].mxu0
        %v1631 = vadd.f32 0.0, %v1630
        %v1632 = vpop.f32.mrb[0].mxu0
        %v1633 = vpop.f32.mrb[0].mxu0
        %v1634 = vpop.f32.mrb[0].mxu0
        %1635 = vdwg.mxu0
        %v1637 = vsel %vm1589, %v1582, 0
        %v1640 = vsel %vm1589, %v1586, 0
        %1642 = vmatprep.subr.bf16.mxu0 0
        %1643 = vmatpush1.bf16.xpose.msra.mxu0 %v1640
        %1644 = vmatprep.subr.bf16.mxu0 0
        %1645 = vmatpush1.bf16.xpose.msra.mxu0 0
        %1646 = vmatprep.subr.bf16.mxu0 0
        %1647 = vmatpush1.bf16.xpose.msra.mxu0 0
        %1648 = vmatprep.subr.bf16.mxu0 0
        %1649 = vmatpush1.bf16.xpose.msra.mxu0 0
        %1650 = vmatprep.subr.bf16.mxu0 0
        %1651 = vmatpush1.bf16.xpose.msra.mxu0 0
        %1652 = vmatprep.subr.bf16.mxu0 0
        %1653 = vmatpush1.bf16.xpose.msra.mxu0 0
        %1654 = vmatprep.subr.bf16.mxu0 0
        %1655 = vmatpush1.bf16.xpose.msra.mxu0 0
        %1656 = vmatprep.subr.bf16.mxu0 0
        %1657 = vmatpush1.bf16.xpose.msra.mxu0 0
        %1658 = vmatprep.subr.bf16.mxu0 0
        %1659 = vmatpush1.bf16.xpose.msra.mxu0 0
        %1660 = vmatprep.subr.bf16.mxu0 0
        %1661 = vmatpush1.bf16.xpose.msra.mxu0 0
        %1662 = vmatprep.subr.bf16.mxu0 0
        %1663 = vmatpush1.bf16.xpose.msra.mxu0 0
        %1664 = vmatprep.subr.bf16.mxu0 0
        %1665 = vmatpush1.bf16.xpose.msra.mxu0 0
        %1666 = vmatprep.subr.bf16.mxu0 0
        %1667 = vmatpush1.bf16.xpose.msra.mxu0 0
        %1668 = vmatprep.subr.bf16.mxu0 0
        %1669 = vmatpush1.bf16.xpose.msra.mxu0 0
        %1670 = vmatprep.subr.bf16.mxu0 0
        %1671 = vmatpush1.bf16.xpose.msra.mxu0 0
        %1672 = vmatprep.subr.bf16.mxu0 0
        %1673 = vmatpush1.bf16.xpose.msra.mxu0 0
        %1674 = vmatprep.mubr.bf16.mxu0 0
        %1675 = vmatmul.mubr.bf16.gmra.mrb[0].mxu0 %v1637
        %v1676 = vpop.f32.mrb[0].mxu0
        %v1677 = vadd.f32 0.0, %v1676
        %v1678 = vpop.f32.mrb[0].mxu0
        %v1679 = vpop.f32.mrb[0].mxu0
        %v1680 = vpop.f32.mrb[0].mxu0
        %1681 = vdwg.mxu0
        %v1683 = vsel %vm1589, %v1583, 0
        %v1686 = vsel %vm1589, %v1587, 0
        %1688 = vmatprep.subr.bf16.mxu0 0
        %1689 = vmatpush1.bf16.xpose.msra.mxu0 %v1686
        %1690 = vmatprep.subr.bf16.mxu0 0
        %1691 = vmatpush1.bf16.xpose.msra.mxu0 0
        %1692 = vmatprep.subr.bf16.mxu0 0
        %1693 = vmatpush1.bf16.xpose.msra.mxu0 0
        %1694 = vmatprep.subr.bf16.mxu0 0
        %1695 = vmatpush1.bf16.xpose.msra.mxu0 0
        %1696 = vmatprep.subr.bf16.mxu0 0
        %1697 = vmatpush1.bf16.xpose.msra.mxu0 0
        %1698 = vmatprep.subr.bf16.mxu0 0
        %1699 = vmatpush1.bf16.xpose.msra.mxu0 0
        %1700 = vmatprep.subr.bf16.mxu0 0
        %1701 = vmatpush1.bf16.xpose.msra.mxu0 0
        %1702 = vmatprep.subr.bf16.mxu0 0
        %1703 = vmatpush1.bf16.xpose.msra.mxu0 0
        %1704 = vmatprep.subr.bf16.mxu0 0
        %1705 = vmatpush1.bf16.xpose.msra.mxu0 0
        %1706 = vmatprep.subr.bf16.mxu0 0
        %1707 = vmatpush1.bf16.xpose.msra.mxu0 0
        %1708 = vmatprep.subr.bf16.mxu0 0
        %1709 = vmatpush1.bf16.xpose.msra.mxu0 0
        %1710 = vmatprep.subr.bf16.mxu0 0
        %1711 = vmatpush1.bf16.xpose.msra.mxu0 0
        %1712 = vmatprep.subr.bf16.mxu0 0
        %1713 = vmatpush1.bf16.xpose.msra.mxu0 0
        %1714 = vmatprep.subr.bf16.mxu0 0
        %1715 = vmatpush1.bf16.xpose.msra.mxu0 0
        %1716 = vmatprep.subr.bf16.mxu0 0
        %1717 = vmatpush1.bf16.xpose.msra.mxu0 0
        %1718 = vmatprep.subr.bf16.mxu0 0
        %1719 = vmatpush1.bf16.xpose.msra.mxu0 0
        %1720 = vmatprep.mubr.bf16.mxu0 0
        %1721 = vmatmul.mubr.bf16.gmra.mrb[0].mxu0 %v1683
        %v1722 = vpop.f32.mrb[0].mxu0
        %v1723 = vadd.f32 0.0, %v1722
        %v1724 = vpop.f32.mrb[0].mxu0
        %v1725 = vpop.f32.mrb[0].mxu0
        %v1726 = vpop.f32.mrb[0].mxu0
        %1727 = vdwg.mxu0
        %v1729 = vsel %vm1589, %v1584, 0
        %v1732 = vsel %vm1589, %v1588, 0
        %1734 = vmatprep.subr.bf16.mxu0 0
        %1735 = vmatpush1.bf16.xpose.msra.mxu0 %v1732
        %1736 = vmatprep.subr.bf16.mxu0 0
        %1737 = vmatpush1.bf16.xpose.msra.mxu0 0
        %1738 = vmatprep.subr.bf16.mxu0 0
        %1739 = vmatpush1.bf16.xpose.msra.mxu0 0
        %1740 = vmatprep.subr.bf16.mxu0 0
        %1741 = vmatpush1.bf16.xpose.msra.mxu0 0
        %1742 = vmatprep.subr.bf16.mxu0 0
        %1743 = vmatpush1.bf16.xpose.msra.mxu0 0
        %1744 = vmatprep.subr.bf16.mxu0 0
        %1745 = vmatpush1.bf16.xpose.msra.mxu0 0
        %1746 = vmatprep.subr.bf16.mxu0 0
        %1747 = vmatpush1.bf16.xpose.msra.mxu0 0
        %1748 = vmatprep.subr.bf16.mxu0 0
        %1749 = vmatpush1.bf16.xpose.msra.mxu0 0
        %1750 = vmatprep.subr.bf16.mxu0 0
        %1751 = vmatpush1.bf16.xpose.msra.mxu0 0
        %1752 = vmatprep.subr.bf16.mxu0 0
        %1753 = vmatpush1.bf16.xpose.msra.mxu0 0
        %1754 = vmatprep.subr.bf16.mxu0 0
        %1755 = vmatpush1.bf16.xpose.msra.mxu0 0
        %1756 = vmatprep.subr.bf16.mxu0 0
        %1757 = vmatpush1.bf16.xpose.msra.mxu0 0
        %1758 = vmatprep.subr.bf16.mxu0 0
        %1759 = vmatpush1.bf16.xpose.msra.mxu0 0
        %1760 = vmatprep.subr.bf16.mxu0 0
        %1761 = vmatpush1.bf16.xpose.msra.mxu0 0
        %1762 = vmatprep.subr.bf16.mxu0 0
        %1763 = vmatpush1.bf16.xpose.msra.mxu0 0
        %1764 = vmatprep.subr.bf16.mxu0 0
        %1765 = vmatpush1.bf16.xpose.msra.mxu0 0
        %1766 = vmatprep.mubr.bf16.mxu0 0
        %1767 = vmatmul.mubr.bf16.gmra.mrb[0].mxu0 %v1729
        %v1768 = vpop.f32.mrb[0].mxu0
        %v1769 = vadd.f32 0.0, %v1768
        %v1770 = vpop.f32.mrb[0].mxu0
        %v1771 = vpop.f32.mrb[0].mxu0
        %v1772 = vpop.f32.mrb[0].mxu0
        %1773 = vdwg.mxu0
        %vm1774 = vcmask 64512
        %v1775 = vsel %vm1774, %v1631, -inf
        %1776 = vmax.xlane.f32.xlu0 %v1775
        %v1777 = vpop.xlane.xlu0 %1776
        %v1778 = vsel %vm1774, %v1677, -inf
        %1779 = vmax.xlane.f32.xlu0 %v1778
        %v1780 = vpop.xlane.xlu0 %1779
        %v1781 = vsel %vm1774, %v1723, -inf
        %1782 = vmax.xlane.f32.xlu0 %v1781
        %v1783 = vpop.xlane.xlu0 %1782
        %v1784 = vsel %vm1774, %v1769, -inf
        %1785 = vmax.xlane.f32.xlu0 %v1784
        %v1786 = vpop.xlane.xlu0 %1785
        %v1787 = vsub.f32 %v1631, %v1777
        %v1788 = vsub.f32 %v1677, %v1780
        %v1789 = vsub.f32 %v1723, %v1783
        %v1790 = vsub.f32 %v1769, %v1786
        %v1791 = vmul.f32 %v1787, 1.442695
        %v1792 = vpow.pop %v1791
        %v1793 = vmul.f32 %v1788, 1.442695
        %v1794 = vpow.pop %v1793
        %v1795 = vmul.f32 %v1789, 1.442695
        %v1796 = vpow.pop %v1795
        %v1797 = vmul.f32 %v1790, 1.442695
        %v1798 = vpow.pop %v1797
        %v1799 = vsel %vm1774, %v1792, 0.0
        %1800 = vadd.xlane.f32.xlu0 %v1799
        %v1801 = vpop.xlane.xlu0 %1800
        %v1802 = vsel %vm1774, %v1794, 0.0
        %1803 = vadd.xlane.f32.xlu0 %v1802
        %v1804 = vpop.xlane.xlu0 %1803
        %v1805 = vsel %vm1774, %v1796, 0.0
        %1806 = vadd.xlane.f32.xlu0 %v1805
        %v1807 = vpop.xlane.xlu0 %1806
        %v1808 = vsel %vm1774, %v1798, 0.0
        %1809 = vadd.xlane.f32.xlu0 %v1808
        %v1810 = vpop.xlane.xlu0 %1809
        %v1811 = vrcp.pop %v1801
        %v1812 = vrcp.pop %v1804
        %v1813 = vrcp.pop %v1807
        %v1814 = vrcp.pop %v1810
        %v1815 = vmul.f32 %v1792, %v1811
        %v1816 = vmul.f32 %v1794, %v1812
        %v1817 = vmul.f32 %v1796, %v1813
        %v1818 = vmul.f32 %v1798, %v1814
        %v1819 = vpack.c.bf16 %v1815, %v1815
        %v1820 = vpack.c.bf16 %v1816, %v1816
        %v1821 = vpack.c.bf16 %v1817, %v1817
        %v1822 = vpack.c.bf16 %v1818, %v1818
        %v1823 = vpack.c.bf16 %v1312, %v1312
        %v1824 = vpack.c.bf16 %v1400, %v1400
        %v1825 = vpack.c.bf16 %v1488, %v1488
        %v1826 = vpack.c.bf16 %v1576, %v1576
        %v1828 = vsel %vm1774, %v1819, 0
        %vm1830 = vcmask 1043456
        %v1832 = vsel %vm1830, %v1823, 0
        %1834 = vmatprep.subr.bf16.mxu0 0
        %1835 = vmatpush1.bf16.msra.mxu0 %v1832
        %1836 = vmatprep.subr.bf16.mxu0 0
        %1837 = vmatpush1.bf16.msra.mxu0 0
        %1838 = vmatprep.subr.bf16.mxu0 0
        %1839 = vmatpush1.bf16.msra.mxu0 0
        %1840 = vmatprep.subr.bf16.mxu0 0
        %1841 = vmatpush1.bf16.msra.mxu0 0
        %1842 = vmatprep.subr.bf16.mxu0 0
        %1843 = vmatpush1.bf16.msra.mxu0 0
        %1844 = vmatprep.subr.bf16.mxu0 0
        %1845 = vmatpush1.bf16.msra.mxu0 0
        %1846 = vmatprep.subr.bf16.mxu0 0
        %1847 = vmatpush1.bf16.msra.mxu0 0
        %1848 = vmatprep.subr.bf16.mxu0 0
        %1849 = vmatpush1.bf16.msra.mxu0 0
        %1850 = vmatprep.subr.bf16.mxu0 0
        %1851 = vmatpush1.bf16.msra.mxu0 0
        %1852 = vmatprep.subr.bf16.mxu0 0
        %1853 = vmatpush1.bf16.msra.mxu0 0
        %1854 = vmatprep.subr.bf16.mxu0 0
        %1855 = vmatpush1.bf16.msra.mxu0 0
        %1856 = vmatprep.subr.bf16.mxu0 0
        %1857 = vmatpush1.bf16.msra.mxu0 0
        %1858 = vmatprep.subr.bf16.mxu0 0
        %1859 = vmatpush1.bf16.msra.mxu0 0
        %1860 = vmatprep.subr.bf16.mxu0 0
        %1861 = vmatpush1.bf16.msra.mxu0 0
        %1862 = vmatprep.subr.bf16.mxu0 0
        %1863 = vmatpush1.bf16.msra.mxu0 0
        %1864 = vmatprep.subr.bf16.mxu0 0
        %1865 = vmatpush1.bf16.msra.mxu0 0
        %1866 = vmatprep.mubr.bf16.mxu0 0
        %1867 = vmatmul.mubr.bf16.gmra.mrb[0].mxu0 %v1828
        %v1868 = vpop.f32.mrb[0].mxu0
        %v1869 = vadd.f32 0.0, %v1868
        %v1870 = vpop.f32.mrb[0].mxu0
        %v1871 = vpop.f32.mrb[0].mxu0
        %v1872 = vpop.f32.mrb[0].mxu0
        %1873 = vdwg.mxu0
        %v1875 = vsel %vm1774, %v1820, 0
        %v1878 = vsel %vm1830, %v1824, 0
        %1880 = vmatprep.subr.bf16.mxu0 0
        %1881 = vmatpush1.bf16.msra.mxu0 %v1878
        %1882 = vmatprep.subr.bf16.mxu0 0
        %1883 = vmatpush1.bf16.msra.mxu0 0
        %1884 = vmatprep.subr.bf16.mxu0 0
        %1885 = vmatpush1.bf16.msra.mxu0 0
        %1886 = vmatprep.subr.bf16.mxu0 0
        %1887 = vmatpush1.bf16.msra.mxu0 0
        %1888 = vmatprep.subr.bf16.mxu0 0
        %1889 = vmatpush1.bf16.msra.mxu0 0
        %1890 = vmatprep.subr.bf16.mxu0 0
        %1891 = vmatpush1.bf16.msra.mxu0 0
        %1892 = vmatprep.subr.bf16.mxu0 0
        %1893 = vmatpush1.bf16.msra.mxu0 0
        %1894 = vmatprep.subr.bf16.mxu0 0
        %1895 = vmatpush1.bf16.msra.mxu0 0
        %1896 = vmatprep.subr.bf16.mxu0 0
        %1897 = vmatpush1.bf16.msra.mxu0 0
        %1898 = vmatprep.subr.bf16.mxu0 0
        %1899 = vmatpush1.bf16.msra.mxu0 0
        %1900 = vmatprep.subr.bf16.mxu0 0
        %1901 = vmatpush1.bf16.msra.mxu0 0
        %1902 = vmatprep.subr.bf16.mxu0 0
        %1903 = vmatpush1.bf16.msra.mxu0 0
        %1904 = vmatprep.subr.bf16.mxu0 0
        %1905 = vmatpush1.bf16.msra.mxu0 0
        %1906 = vmatprep.subr.bf16.mxu0 0
        %1907 = vmatpush1.bf16.msra.mxu0 0
        %1908 = vmatprep.subr.bf16.mxu0 0
        %1909 = vmatpush1.bf16.msra.mxu0 0
        %1910 = vmatprep.subr.bf16.mxu0 0
        %1911 = vmatpush1.bf16.msra.mxu0 0
        %1912 = vmatprep.mubr.bf16.mxu0 0
        %1913 = vmatmul.mubr.bf16.gmra.mrb[0].mxu0 %v1875
        %v1914 = vpop.f32.mrb[0].mxu0
        %v1915 = vadd.f32 0.0, %v1914
        %v1916 = vpop.f32.mrb[0].mxu0
        %v1917 = vpop.f32.mrb[0].mxu0
        %v1918 = vpop.f32.mrb[0].mxu0
        %1919 = vdwg.mxu0
        %v1921 = vsel %vm1774, %v1821, 0
        %v1924 = vsel %vm1830, %v1825, 0
        %1926 = vmatprep.subr.bf16.mxu0 0
        %1927 = vmatpush1.bf16.msra.mxu0 %v1924
        %1928 = vmatprep.subr.bf16.mxu0 0
        %1929 = vmatpush1.bf16.msra.mxu0 0
        %1930 = vmatprep.subr.bf16.mxu0 0
        %1931 = vmatpush1.bf16.msra.mxu0 0
        %1932 = vmatprep.subr.bf16.mxu0 0
        %1933 = vmatpush1.bf16.msra.mxu0 0
        %1934 = vmatprep.subr.bf16.mxu0 0
        %1935 = vmatpush1.bf16.msra.mxu0 0
        %1936 = vmatprep.subr.bf16.mxu0 0
        %1937 = vmatpush1.bf16.msra.mxu0 0
        %1938 = vmatprep.subr.bf16.mxu0 0
        %1939 = vmatpush1.bf16.msra.mxu0 0
        %1940 = vmatprep.subr.bf16.mxu0 0
        %1941 = vmatpush1.bf16.msra.mxu0 0
        %1942 = vmatprep.subr.bf16.mxu0 0
        %1943 = vmatpush1.bf16.msra.mxu0 0
        %1944 = vmatprep.subr.bf16.mxu0 0
        %1945 = vmatpush1.bf16.msra.mxu0 0
        %1946 = vmatprep.subr.bf16.mxu0 0
        %1947 = vmatpush1.bf16.msra.mxu0 0
        %1948 = vmatprep.subr.bf16.mxu0 0
        %1949 = vmatpush1.bf16.msra.mxu0 0
        %1950 = vmatprep.subr.bf16.mxu0 0
        %1951 = vmatpush1.bf16.msra.mxu0 0
        %1952 = vmatprep.subr.bf16.mxu0 0
        %1953 = vmatpush1.bf16.msra.mxu0 0
        %1954 = vmatprep.subr.bf16.mxu0 0
        %1955 = vmatpush1.bf16.msra.mxu0 0
        %1956 = vmatprep.subr.bf16.mxu0 0
        %1957 = vmatpush1.bf16.msra.mxu0 0
        %1958 = vmatprep.mubr.bf16.mxu0 0
        %1959 = vmatmul.mubr.bf16.gmra.mrb[0].mxu0 %v1921
        %v1960 = vpop.f32.mrb[0].mxu0
        %v1961 = vadd.f32 0.0, %v1960
        %v1962 = vpop.f32.mrb[0].mxu0
        %v1963 = vpop.f32.mrb[0].mxu0
        %v1964 = vpop.f32.mrb[0].mxu0
        %1965 = vdwg.mxu0
        %v1967 = vsel %vm1774, %v1822, 0
        %v1970 = vsel %vm1830, %v1826, 0
        %1972 = vmatprep.subr.bf16.mxu0 0
        %1973 = vmatpush1.bf16.msra.mxu0 %v1970
        %1974 = vmatprep.subr.bf16.mxu0 0
        %1975 = vmatpush1.bf16.msra.mxu0 0
        %1976 = vmatprep.subr.bf16.mxu0 0
        %1977 = vmatpush1.bf16.msra.mxu0 0
        %1978 = vmatprep.subr.bf16.mxu0 0
        %1979 = vmatpush1.bf16.msra.mxu0 0
        %1980 = vmatprep.subr.bf16.mxu0 0
        %1981 = vmatpush1.bf16.msra.mxu0 0
        %1982 = vmatprep.subr.bf16.mxu0 0
        %1983 = vmatpush1.bf16.msra.mxu0 0
        %1984 = vmatprep.subr.bf16.mxu0 0
        %1985 = vmatpush1.bf16.msra.mxu0 0
        %1986 = vmatprep.subr.bf16.mxu0 0
        %1987 = vmatpush1.bf16.msra.mxu0 0
        %1988 = vmatprep.subr.bf16.mxu0 0
        %1989 = vmatpush1.bf16.msra.mxu0 0
        %1990 = vmatprep.subr.bf16.mxu0 0
        %1991 = vmatpush1.bf16.msra.mxu0 0
        %1992 = vmatprep.subr.bf16.mxu0 0
        %1993 = vmatpush1.bf16.msra.mxu0 0
        %1994 = vmatprep.subr.bf16.mxu0 0
        %1995 = vmatpush1.bf16.msra.mxu0 0
        %1996 = vmatprep.subr.bf16.mxu0 0
        %1997 = vmatpush1.bf16.msra.mxu0 0
        %1998 = vmatprep.subr.bf16.mxu0 0
        %1999 = vmatpush1.bf16.msra.mxu0 0
        %2000 = vmatprep.subr.bf16.mxu0 0
        %2001 = vmatpush1.bf16.msra.mxu0 0
        %2002 = vmatprep.subr.bf16.mxu0 0
        %2003 = vmatpush1.bf16.msra.mxu0 0
        %2004 = vmatprep.mubr.bf16.mxu0 0
        %2005 = vmatmul.mubr.bf16.gmra.mrb[0].mxu0 %v1967
        %v2006 = vpop.f32.mrb[0].mxu0
        %v2007 = vadd.f32 0.0, %v2006
        %v2008 = vpop.f32.mrb[0].mxu0
        %v2009 = vpop.f32.mrb[0].mxu0
        %v2010 = vpop.f32.mrb[0].mxu0
        %2011 = vdwg.mxu0
        %v2012 = vpack.c.bf16 %v1869, %v1869
        %v2013 = vpack.c.bf16 %v1915, %v1915
        %v2014 = vpack.c.bf16 %v1961, %v1961
        %v2015 = vpack.c.bf16 %v2007, %v2007
        %v2016 = vld [vmem:[%s6] sm:$0xf]
        %v2017 = vld [vmem:[%s6 + $0x4] sm:$0xf]
        %v2018 = vld [vmem:[%s6 + $0x8] sm:$0xf]
        %v2019 = vld [vmem:[%s6 + $0xc] sm:$0xf]
        %v2020 = vld [vmem:[%s6 + $0x10] sm:$0xf]
        %v2021 = vld [vmem:[%s6 + $0x14] sm:$0xf]
        %v2022 = vld [vmem:[%s6 + $0x18] sm:$0xf]
        %v2023 = vld [vmem:[%s6 + $0x1c] sm:$0xf]
        %v2026 = vunpack.c.l.b16 %v2016
        %v2027 = vunpack.c.l.b16 %v2017
        %v2028 = vpack.c.b16 %v2027, %v2026
        %v2031 = vsel %vm1589, %v2012, 0
        %2033 = vmatprep.subr.bf16.mxu0 0
        %2034 = vmatpush1.bf16.msra.mxu0 %v2028
        %2035 = vmatprep.subr.bf16.mxu0 0
        %2036 = vmatpush1.bf16.msra.mxu0 0
        %2037 = vmatprep.subr.bf16.mxu0 0
        %2038 = vmatpush1.bf16.msra.mxu0 0
        %2039 = vmatprep.subr.bf16.mxu0 0
        %2040 = vmatpush1.bf16.msra.mxu0 0
        %2041 = vmatprep.subr.bf16.mxu0 0
        %2042 = vmatpush1.bf16.msra.mxu0 0
        %2043 = vmatprep.subr.bf16.mxu0 0
        %2044 = vmatpush1.bf16.msra.mxu0 0
        %2045 = vmatprep.subr.bf16.mxu0 0
        %2046 = vmatpush1.bf16.msra.mxu0 0
        %2047 = vmatprep.subr.bf16.mxu0 0
        %2048 = vmatpush1.bf16.msra.mxu0 0
        %2049 = vmatprep.subr.bf16.mxu0 0
        %2050 = vmatpush1.bf16.msra.mxu0 0
        %2051 = vmatprep.subr.bf16.mxu0 0
        %2052 = vmatpush1.bf16.msra.mxu0 0
        %2053 = vmatprep.subr.bf16.mxu0 0
        %2054 = vmatpush1.bf16.msra.mxu0 0
        %2055 = vmatprep.subr.bf16.mxu0 0
        %2056 = vmatpush1.bf16.msra.mxu0 0
        %2057 = vmatprep.subr.bf16.mxu0 0
        %2058 = vmatpush1.bf16.msra.mxu0 0
        %2059 = vmatprep.subr.bf16.mxu0 0
        %2060 = vmatpush1.bf16.msra.mxu0 0
        %2061 = vmatprep.subr.bf16.mxu0 0
        %2062 = vmatpush1.bf16.msra.mxu0 0
        %2063 = vmatprep.subr.bf16.mxu0 0
        %2064 = vmatpush1.bf16.msra.mxu0 0
        %2065 = vmatprep.mubr.bf16.mxu0 0
        %2066 = vmatmul.mubr.bf16.gmra.mrb[0].mxu0 %v2031
        %v2067 = vpop.f32.mrb[0].mxu0
        %v2068 = vadd.f32 0.0, %v2067
        %v2069 = vpop.f32.mrb[0].mxu0
        %v2070 = vpop.f32.mrb[0].mxu0
        %v2071 = vpop.f32.mrb[0].mxu0
        %2072 = vdwg.mxu0
        %v2075 = vunpack.c.l.b16 %v2018
        %v2076 = vunpack.c.l.b16 %v2019
        %v2077 = vpack.c.b16 %v2076, %v2075
        %v2080 = vsel %vm1589, %v2013, 0
        %2082 = vmatprep.subr.bf16.mxu0 0
        %2083 = vmatpush1.bf16.msra.mxu0 %v2077
        %2084 = vmatprep.subr.bf16.mxu0 0
        %2085 = vmatpush1.bf16.msra.mxu0 0
        %2086 = vmatprep.subr.bf16.mxu0 0
        %2087 = vmatpush1.bf16.msra.mxu0 0
        %2088 = vmatprep.subr.bf16.mxu0 0
        %2089 = vmatpush1.bf16.msra.mxu0 0
        %2090 = vmatprep.subr.bf16.mxu0 0
        %2091 = vmatpush1.bf16.msra.mxu0 0
        %2092 = vmatprep.subr.bf16.mxu0 0
        %2093 = vmatpush1.bf16.msra.mxu0 0
        %2094 = vmatprep.subr.bf16.mxu0 0
        %2095 = vmatpush1.bf16.msra.mxu0 0
        %2096 = vmatprep.subr.bf16.mxu0 0
        %2097 = vmatpush1.bf16.msra.mxu0 0
        %2098 = vmatprep.subr.bf16.mxu0 0
        %2099 = vmatpush1.bf16.msra.mxu0 0
        %2100 = vmatprep.subr.bf16.mxu0 0
        %2101 = vmatpush1.bf16.msra.mxu0 0
        %2102 = vmatprep.subr.bf16.mxu0 0
        %2103 = vmatpush1.bf16.msra.mxu0 0
        %2104 = vmatprep.subr.bf16.mxu0 0
        %2105 = vmatpush1.bf16.msra.mxu0 0
        %2106 = vmatprep.subr.bf16.mxu0 0
        %2107 = vmatpush1.bf16.msra.mxu0 0
        %2108 = vmatprep.subr.bf16.mxu0 0
        %2109 = vmatpush1.bf16.msra.mxu0 0
        %2110 = vmatprep.subr.bf16.mxu0 0
        %2111 = vmatpush1.bf16.msra.mxu0 0
        %2112 = vmatprep.subr.bf16.mxu0 0
        %2113 = vmatpush1.bf16.msra.mxu0 0
        %2114 = vmatprep.mubr.bf16.mxu0 0
        %2115 = vmatmul.mubr.bf16.gmra.mrb[0].mxu0 %v2080
        %v2116 = vpop.f32.mrb[0].mxu0
        %v2117 = vadd.f32 0.0, %v2116
        %v2118 = vpop.f32.mrb[0].mxu0
        %v2119 = vpop.f32.mrb[0].mxu0
        %v2120 = vpop.f32.mrb[0].mxu0
        %2121 = vdwg.mxu0
        %v2124 = vunpack.c.l.b16 %v2020
        %v2125 = vunpack.c.l.b16 %v2021
        %v2126 = vpack.c.b16 %v2125, %v2124
        %v2129 = vsel %vm1589, %v2014, 0
        %2131 = vmatprep.subr.bf16.mxu0 0
        %2132 = vmatpush1.bf16.msra.mxu0 %v2126
        %2133 = vmatprep.subr.bf16.mxu0 0
        %2134 = vmatpush1.bf16.msra.mxu0 0
        %2135 = vmatprep.subr.bf16.mxu0 0
        %2136 = vmatpush1.bf16.msra.mxu0 0
        %2137 = vmatprep.subr.bf16.mxu0 0
        %2138 = vmatpush1.bf16.msra.mxu0 0
        %2139 = vmatprep.subr.bf16.mxu0 0
        %2140 = vmatpush1.bf16.msra.mxu0 0
        %2141 = vmatprep.subr.bf16.mxu0 0
        %2142 = vmatpush1.bf16.msra.mxu0 0
        %2143 = vmatprep.subr.bf16.mxu0 0
        %2144 = vmatpush1.bf16.msra.mxu0 0
        %2145 = vmatprep.subr.bf16.mxu0 0
        %2146 = vmatpush1.bf16.msra.mxu0 0
        %2147 = vmatprep.subr.bf16.mxu0 0
        %2148 = vmatpush1.bf16.msra.mxu0 0
        %2149 = vmatprep.subr.bf16.mxu0 0
        %2150 = vmatpush1.bf16.msra.mxu0 0
        %2151 = vmatprep.subr.bf16.mxu0 0
        %2152 = vmatpush1.bf16.msra.mxu0 0
        %2153 = vmatprep.subr.bf16.mxu0 0
        %2154 = vmatpush1.bf16.msra.mxu0 0
        %2155 = vmatprep.subr.bf16.mxu0 0
        %2156 = vmatpush1.bf16.msra.mxu0 0
        %2157 = vmatprep.subr.bf16.mxu0 0
        %2158 = vmatpush1.bf16.msra.mxu0 0
        %2159 = vmatprep.subr.bf16.mxu0 0
        %2160 = vmatpush1.bf16.msra.mxu0 0
        %2161 = vmatprep.subr.bf16.mxu0 0
        %2162 = vmatpush1.bf16.msra.mxu0 0
        %2163 = vmatprep.mubr.bf16.mxu0 0
        %2164 = vmatmul.mubr.bf16.gmra.mrb[0].mxu0 %v2129
        %v2165 = vpop.f32.mrb[0].mxu0
        %v2166 = vadd.f32 0.0, %v2165
        %v2167 = vpop.f32.mrb[0].mxu0
        %v2168 = vpop.f32.mrb[0].mxu0
        %v2169 = vpop.f32.mrb[0].mxu0
        %2170 = vdwg.mxu0
        %v2173 = vunpack.c.l.b16 %v2022
        %v2174 = vunpack.c.l.b16 %v2023
        %v2175 = vpack.c.b16 %v2174, %v2173
        %v2178 = vsel %vm1589, %v2015, 0
        %2180 = vmatprep.subr.bf16.mxu0 0
        %2181 = vmatpush1.bf16.msra.mxu0 %v2175
        %2182 = vmatprep.subr.bf16.mxu0 0
        %2183 = vmatpush1.bf16.msra.mxu0 0
        %2184 = vmatprep.subr.bf16.mxu0 0
        %2185 = vmatpush1.bf16.msra.mxu0 0
        %2186 = vmatprep.subr.bf16.mxu0 0
        %2187 = vmatpush1.bf16.msra.mxu0 0
        %2188 = vmatprep.subr.bf16.mxu0 0
        %2189 = vmatpush1.bf16.msra.mxu0 0
        %2190 = vmatprep.subr.bf16.mxu0 0
        %2191 = vmatpush1.bf16.msra.mxu0 0
        %2192 = vmatprep.subr.bf16.mxu0 0
        %2193 = vmatpush1.bf16.msra.mxu0 0
        %2194 = vmatprep.subr.bf16.mxu0 0
        %2195 = vmatpush1.bf16.msra.mxu0 0
        %2196 = vmatprep.subr.bf16.mxu0 0
        %2197 = vmatpush1.bf16.msra.mxu0 0
        %2198 = vmatprep.subr.bf16.mxu0 0
        %2199 = vmatpush1.bf16.msra.mxu0 0
        %2200 = vmatprep.subr.bf16.mxu0 0
        %2201 = vmatpush1.bf16.msra.mxu0 0
        %2202 = vmatprep.subr.bf16.mxu0 0
        %2203 = vmatpush1.bf16.msra.mxu0 0
        %2204 = vmatprep.subr.bf16.mxu0 0
        %2205 = vmatpush1.bf16.msra.mxu0 0
        %2206 = vmatprep.subr.bf16.mxu0 0
        %2207 = vmatpush1.bf16.msra.mxu0 0
        %2208 = vmatprep.subr.bf16.mxu0 0
        %2209 = vmatpush1.bf16.msra.mxu0 0
        %2210 = vmatprep.subr.bf16.mxu0 0
        %2211 = vmatpush1.bf16.msra.mxu0 0
        %2212 = vmatprep.mubr.bf16.mxu0 0
        %2213 = vmatmul.mubr.bf16.gmra.mrb[0].mxu0 %v2178
        %v2214 = vpop.f32.mrb[0].mxu0
        %v2215 = vadd.f32 0.0, %v2214
        %v2216 = vpop.f32.mrb[0].mxu0
        %v2217 = vpop.f32.mrb[0].mxu0
        %v2218 = vpop.f32.mrb[0].mxu0
        %2219 = vdwg.mxu0
        %v2220 = vadd.f32 %v2068, %v2117
        %v2221 = vadd.f32 %v2220, %v2166
        %v2222 = vadd.f32 %v2221, %v2215
        %v2223 = vld [vmem:[%s7] sm:$0x1]
        %v2225 = vlaneseq
        %v2226 = vshrl.u32 %v2225, 7
        %v2227 = vsub.s32 0, %v2226
        %v2228 = vrot.slane %v2223, %v2227
        %v2230 = vadd.f32 %v2222, %v2228
        %2231 = vst [vmem:[%s296] sm:$0xff] %v2230
        %s2232 = sand.u32 %s203, 1
        %s2233 = scalar_lea.sflag [#allocation3], %s2232
        %s2234 = sand.u32 %s203, 1
        %s2235 = smul.addr %s2234, 8
        %s2236 = scalar_lea.vmem [#allocation2], %s2235
        // Predicated region
        $region53: #{tpu_custom_call.1} parent=51 // pred_check
          %p2237 = pneg %p213
        $region54: #{tpu_custom_call.1} parent=51 // pred_check_branch
          %2239 = sbr.rel (%p2237) target = $region56
        $region55: #{tpu_custom_call.1} parent=51 // pred_region
          %s2241 = ssub.s32 128, 128
          %2242 = vsyncadd %s2233, %s2241
          %s2243 = smul.addr %s22, 128
          %s2244 = scalar_lea.hbm %s8, %s2243
          %s2246 = sshll.u32 %s2236, 4
          %s2247 = int_to_ptr.vmem [resolvable:$true] %s2246
          %2249 = dma.vmem_to_hbm [thread:$0]  %s2247, 128, %s2244, %s2233
        $region56: #{tpu_custom_call.1} parent=51 // pred_fallthru
          _
      $region52: #{tpu_custom_call.1} parent=5 // pred_fallthru
        _
      %p2250 = scmp.le.s32.totalorder 2, %s17
      // Predicated region
      $region57: #{tpu_custom_call.1} parent=5 // pred_check
        %p2251 = pneg %p2250
      $region58: #{tpu_custom_call.1} parent=5 // pred_check_branch
        %2253 = sbr.rel (%p2251) target = $region60
      $region59: #{tpu_custom_call.1} parent=5 // pred_region
        %s2254 = ssub.s32 %s17, 2
        // Predicated region
        $region61: #{tpu_custom_call.1} parent=59 // pred_check
          %p2255 = pneg %p219
        $region62: #{tpu_custom_call.1} parent=59 // pred_check_branch
          %2257 = sbr.rel (%p2255) target = $region64
        $region63: #{tpu_custom_call.1} parent=59 // pred_region
          %s2258 = sand.u32 %s204, 1
          %s2259 = scalar_lea.sflag [#allocation3], %s2258
          %s2260 = sand.u32 %s204, 1
          %s2261 = smul.addr %s2260, 8
          %s2262 = scalar_lea.vmem [#allocation2], %s2261
          %2263 = dma.done %s2259, 128
        $region64: #{tpu_custom_call.1} parent=59 // pred_fallthru
          _
      $region60: #{tpu_custom_call.1} parent=5 // pred_fallthru
        _
    $region6: #{tpu_custom_call.1} parent=1 // loop_footer
      %s21 = sadd.s32 1, %s17
    $region7: #{tpu_custom_call.1} parent=1 // loop_footer_branch
      %16 = sbr.rel target = $region3
    $region8: #{tpu_custom_call.1} parent=1 // loop_exit
      _
    %2264 = vsyncpa [#allocation3], 1
    %s2265 = scalar_lea.sflag [#allocation3], 1
    %2266 = vsyncpa %s2265, 1

</llo_original>
